<compile_context>
chip_gen: v5e
topology: v5e:2x2
jax: 0.10.0
libtpu: 0.0.40
codegen_flags: <defaults>
</compile_context>

<pallas_src>
import functools

import jax
import jax.numpy as jnp
import numpy as np
from jax import lax
from jax.experimental import pallas as pl
from jax.experimental.pallas import tpu as pltpu


def _round_up(x, m):
    return ((x + m - 1) // m) * m


def _sine_layer_kernel(x_ref, w_ref, b_ref, o_ref, *, omega_0):
    # x_ref: (tm, D_in)   w_ref: (D_out_p, D_in)  [PyTorch layout, no host transpose]
    # b_ref: (1, D_out_p) o_ref: (tm, D_out_p)
    z = lax.dot_general(
        x_ref[...], w_ref[...],
        dimension_numbers=(((1,), (1,)), ((), ())),   # contract last dims: x @ W^T
        preferred_element_type=jnp.float32,           # f32 MXU accumulation
    )
    z = z + b_ref[...].astype(jnp.float32)            # broadcast bias over rows (f32)
    o_ref[...] = jnp.sin(omega_0 * z).astype(o_ref.dtype)


def _choose_tm(n_rows, d_in, d_out_p, itemsize, tm_request):
    """Largest legal row tile that fits a conservative VMEM budget, >=2 grid steps if possible."""
    budget = 32 * 1024 * 1024                          # conservative across v5e/v6e/v7x
    fixed = 2 * (d_out_p * d_in + d_out_p) * itemsize  # double-buffered W + b
    per_row = 2 * (d_in + d_out_p) * itemsize          # double-buffered x-tile + y-tile row
    cap = max(8, ((budget - fixed) // max(per_row, 1)) // 8 * 8)
    tm = min(tm_request, cap)
    n_pad8 = _round_up(n_rows, 8)
    if tm >= n_pad8:
        # keep the grid >= 2 so ("parallel",) can use both TensorCores on v7x
        tm = max(8, _round_up(pl.cdiv(n_rows, 2), 8)) if n_rows > 8 else n_pad8
    return tm


def sine_layer_forward(x, weight, bias, omega_0=30.0, *, tm=512, io_dtype=None):
    """x: [..., D_in], weight: [D_out, D_in] (PyTorch layout), bias: [D_out]."""
    orig_shape = x.shape
    d_in = orig_shape[-1]
    d_out = weight.shape[0]
    out_dtype = x.dtype

    x2 = x.reshape(-1, d_in)
    n_rows = x2.shape[0]

    if io_dtype is not None:                 # optional bf16 I/O for v6e/v7x
        x2 = x2.astype(io_dtype)
        weight = weight.astype(io_dtype)
        bias = bias.astype(io_dtype)

    # Lane-dense output: pad D_out to a multiple of 128 (no-op for typical SIREN widths).
    d_out_p = _round_up(d_out, 128)
    if d_out_p != d_out:
        weight = jnp.pad(weight, ((0, d_out_p - d_out), (0, 0)))
        bias = jnp.pad(bias, (0, d_out_p - d_out))
    b2 = bias.reshape(1, d_out_p)

    itemsize = jnp.dtype(x2.dtype).itemsize
    tm_eff = _choose_tm(n_rows, d_in, d_out_p, itemsize, tm)

    grid = pl.cdiv(n_rows, tm_eff)
    n_pad = grid * tm_eff
    if n_pad != n_rows:                      # ragged batch: pad rows, slice after
        x2 = jnp.pad(x2, ((0, n_pad - n_rows), (0, 0)))

    kernel = functools.partial(_sine_layer_kernel, omega_0=float(omega_0))

    y = pl.pallas_call(
        kernel,
        out_shape=jax.ShapeDtypeStruct((n_pad, d_out_p), x2.dtype),
        grid_spec=pltpu.PrefetchScalarGridSpec(
            num_scalar_prefetch=0,
            grid=(grid,),
            in_specs=[
                pl.BlockSpec((tm_eff, d_in), lambda i: (i, 0)),      # x row tile
                pl.BlockSpec((d_out_p, d_in), lambda i: (0, 0)),     # full weight (resident)
                pl.BlockSpec((1, d_out_p), lambda i: (0, 0)),        # full bias (resident)
            ],
            out_specs=pl.BlockSpec((tm_eff, d_out_p), lambda i: (i, 0)),
        ),
        compiler_params=pltpu.CompilerParams(
            dimension_semantics=("parallel",),
            vmem_limit_bytes=48 * 1024 * 1024,   # > default scoped limit, < v7x 64 MiB physical
        ),
    )(x2, weight, b2)

    y = y[:n_rows, :d_out].astype(out_dtype)
    return y.reshape(orig_shape[:-1] + (d_out,))


def init_sine_layer_params(key, in_features, out_features, is_first=False, omega_0=30.0):
    """Deterministic re-implementation of SineLayer.__init__ / init_weights."""
    kw, kb = jax.random.split(key)
    if is_first:
        w_bound = 1.0 / in_features
    else:
        w_bound = float(np.sqrt(6.0 / in_features) / omega_0)
    weight = jax.random.uniform(
        kw, (out_features, in_features), jnp.float32, minval=-w_bound, maxval=w_bound)
    # nn.Linear default bias init (init_weights does not override bias):
    b_bound = 1.0 / float(np.sqrt(in_features))
    bias = jax.random.uniform(
        kb, (out_features,), jnp.float32, minval=-b_bound, maxval=b_bound)
    return weight, bias


if __name__ == "__main__":
    key = jax.random.PRNGKey(0)
    k_x, k_p = jax.random.split(key)

    # Small shapes that exercise the ragged-row path (N=200) and the lane-padding
    # path (D_out=64 -> padded to 128 inside the wrapper).
    N, in_features, out_features = 200, 32, 64
    omega_0 = 30.0

    x = jax.random.uniform(k_x, (N, in_features), jnp.float32, minval=-1.0, maxval=1.0)
    weight, bias = init_sine_layer_params(
        k_p, in_features, out_features, is_first=True, omega_0=omega_0)

    y = sine_layer_forward(x, weight, bias, omega_0=omega_0)
    y = jax.block_until_ready(y)

    # Pure-JAX reference check (same math, no Pallas).
    y_ref = jnp.sin(omega_0 * (x @ weight.T + bias))
    np.testing.assert_allclose(np.asarray(y), np.asarray(y_ref), rtol=1e-5, atol=2e-5)

    print("KERNEL_OK")
</pallas_src>

<mosaic_0001>
module attributes {stable_mosaic.version = 11 : i64} {
  func.func @_sine_layer_kernel(%arg0: i32, %arg1: memref<104x32xf32, #tpu.memory_space<vmem>>, %arg2: memref<128x32xf32, #tpu.memory_space<vmem>>, %arg3: memref<1x128xf32, #tpu.memory_space<vmem>>, %arg4: memref<104x128xf32, #tpu.memory_space<vmem>>) attributes {dimension_semantics = [#tpu.dimension_semantics<parallel>], iteration_bounds = array<i64: 2>, scalar_prefetch = 0 : i64, scratch_operands = 0 : i64, tpu.core_type = #tpu.core_type<tc>, window_params = [{transform_indices = @transform_0, window_bounds = array<i64: 104, 32>}, {pipeline_mode = #tpu.pipeline_mode<synchronous>, transform_indices = @transform_1, window_bounds = array<i64: 128, 32>}, {pipeline_mode = #tpu.pipeline_mode<synchronous>, transform_indices = @transform_2, window_bounds = array<i64: 1, 128>}, {transform_indices = @transform_3, window_bounds = array<i64: 104, 128>}]} {
    %c0 = arith.constant 0 : index
    %c0_0 = arith.constant 0 : index
    %0 = vector.load %arg1[%c0, %c0_0] : memref<104x32xf32, #tpu.memory_space<vmem>>, vector<104x32xf32>
    %c0_1 = arith.constant 0 : index
    %c0_2 = arith.constant 0 : index
    %1 = vector.load %arg2[%c0_1, %c0_2] : memref<128x32xf32, #tpu.memory_space<vmem>>, vector<128x32xf32>
    %cst = arith.constant dense<0.000000e+00> : vector<104x128xf32>
    %2 = tpu.matmul %0, %1, %cst {dimension_numbers = #tpu.dot_dimension_numbers<[1], [1], [0], [0], [0, 0, 1, 0], [], []>} : vector<104x32xf32>, vector<128x32xf32>, vector<104x128xf32> -> vector<104x128xf32>
    %c0_3 = arith.constant 0 : index
    %c0_4 = arith.constant 0 : index
    %3 = vector.load %arg3[%c0_3, %c0_4] : memref<1x128xf32, #tpu.memory_space<vmem>>, vector<1x128xf32>
    %4 = vector.broadcast %3 : vector<1x128xf32> to vector<104x128xf32>
    %5 = arith.addf %2, %4 : vector<104x128xf32>
    %cst_5 = arith.constant 3.000000e+01 : f32
    %6 = vector.broadcast %cst_5 : f32 to vector<104x128xf32>
    %7 = arith.mulf %6, %5 : vector<104x128xf32>
    %8 = math.sin %7 : vector<104x128xf32>
    %c0_6 = arith.constant 0 : index
    %c0_7 = arith.constant 0 : index
    %9 = vector.load %arg4[%c0_6, %c0_7] : memref<104x128xf32, #tpu.memory_space<vmem>>, vector<104x128xf32>
    tpu.vector_store %arg4[%c0_6, %c0_7], %8 {strides = array<i32>} : memref<104x128xf32, #tpu.memory_space<vmem>>, vector<104x128xf32>,
    return
  }
  func.func @transform_0(%arg0: i32) -> (i32, i32) {
    %c0_i32 = arith.constant 0 : i32
    %c0_i32_0 = arith.constant 0 : i32
    return %arg0, %c0_i32 : i32, i32
  }
  func.func @transform_1(%arg0: i32) -> (i32, i32) {
    %c0_i32 = arith.constant 0 : i32
    %c0_i32_0 = arith.constant 0 : i32
    %c0_i32_1 = arith.constant 0 : i32
    return %c0_i32, %c0_i32_0 : i32, i32
  }
  func.func @transform_2(%arg0: i32) -> (i32, i32) {
    %c0_i32 = arith.constant 0 : i32
    %c0_i32_0 = arith.constant 0 : i32
    %c0_i32_1 = arith.constant 0 : i32
    return %c0_i32, %c0_i32_0 : i32, i32
  }
  func.func @transform_3(%arg0: i32) -> (i32, i32) {
    %c0_i32 = arith.constant 0 : i32
    %c0_i32_0 = arith.constant 0 : i32
    return %arg0, %c0_i32 : i32, i32
  }
}

</mosaic_0001>

<llo_original>
// kernel: tpu_custom_call.1
$region0: #{tpu_custom_call.1}
  #allocation0 [shape = 'u32[]', space=smem, size = 0x4, offset = 0x4, fixed_abs, tag = 'smem constant byte address 0x4 - core index']
  #allocation1 [shape = 'u32[72,128]{1,0:T(1,128)}', space=vmem, size = 0x9000, scoped, tag = 'internal scratch']
  %s0 = inlined_call_operand.vmem [shape: f32[208,32], index: 0, kind: input, shape index: {}]
  %s1 = inlined_call_operand.vmem [shape: f32[128,32], index: 1, kind: input, shape index: {}]
  %s2 = inlined_call_operand.vmem [shape: f32[1,128], index: 2, kind: input, shape index: {}]
  %s3 = inlined_call_operand.hbm [shape: f32[208,128], index: 3, kind: output, shape index: {}]
  %s4 = sld [smem:[#allocation0]]
  $region45: #{tpu_custom_call.1} parent=0
    _
  %s6 = ssub.s32 1, %s4
  %s7 = scalar_select 0, %s6, %s4
  $region1: #{tpu_custom_call.1} parent=0
    #allocation2 [shape = 'u8[106496]{0}', space=vmem, size = 0x1a000, scoped, tag = 'output window, operand 0']
    #allocation3 [shape = 's32[2]{0}', space=sflag, size = 0x8, scoped, tag = 'scoped memory for tpu_custom_call.1']
    %8 = vsyncpa [#allocation3], 0
    %s9 = scalar_lea.sflag [#allocation3], 1
    %10 = vsyncpa %s9, 0
    loop: start=0, step=1, limit=4
    $region2: #{tpu_custom_call.1} parent=1 // loop_pre_header
      _
    $region3: #{tpu_custom_call.1} parent=1 // loop_header
      %s12 = sphi 0, %s16
      %p13 = scmp.ge.s32.totalorder %s12, 4
      %s22 = sphi 0, %s24
      %s25 = sphi 0, %s22
      %s26 = sphi 0, %s25
      %s42 = sphi 0, %s26
      %s46 = sphi 0, %s46
      %s48 = sphi 0, %s46
      %s49 = sphi 0, %s48
      %s63 = sphi 0, %s49
      %s67 = sphi 0, %s67
      %s69 = sphi 0, %s67
      %s70 = sphi 0, %s69
      %s84 = sphi 0, %s70
      %s90 = sphi 0, %s92
      %s93 = sphi 0, %s90
      %s94 = sphi 0, %s93
      %s110 = sphi 0, %s94
    $region4: #{tpu_custom_call.1} parent=1 // loop_header_branch
      %15 = sbr.rel (%p13) target = $region8
    $region5: #{tpu_custom_call.1} parent=1 // loop_body
      %s17 = ssub.s32 %s12, 1
      %s18 = ssub.s32 %s12, 2
      %s19 = sadd.s32 %s12, 1
      %s20 = ssub.s32 %s12, %s19
      %p21 = scmp.eq.s32.totalorder %s20, 0
      %s23 = sadd.s32 %s22, 1
      %s24 = scalar_select %p21, %s22, %s23
      %p27 = pneg %p21
      %p28 = scmp.eq.s32.totalorder %s12, 1
      %p29 = por %p27, %p28
      %p30 = scmp.ne.s32.totalorder %s22, %s25
      %p31 = scmp.eq.s32.totalorder %s12, 0
      %p32 = por %p30, %p31
      %p33 = scmp.ne.s32.totalorder %s22, %s25
      %p34 = scmp.eq.s32.totalorder %s17, 1
      %p35 = por %p33, %p34
      %p36 = scmp.ne.s32.totalorder %s25, %s26
      %p37 = scmp.eq.s32.totalorder %s17, 0
      %p38 = por %p36, %p37
      %p39 = scmp.ne.s32.totalorder %s25, %s26
      %p40 = scmp.eq.s32.totalorder %s18, 1
      %p41 = por %p39, %p40
      %p43 = scmp.ne.s32.totalorder %s26, %s42
      %p44 = scmp.eq.s32.totalorder %s18, 0
      %p45 = por %p43, %p44
      %s47 = sadd.s32 %s46, 1
      %p50 = scmp.eq.s32.totalorder %s12, 1
      %p51 = scmp.ne.s32.totalorder %s46, %s48
      %p52 = scmp.eq.s32.totalorder %s12, 0
      %p53 = por %p51, %p52
      %p54 = scmp.ne.s32.totalorder %s46, %s48
      %p55 = scmp.eq.s32.totalorder %s17, 1
      %p56 = por %p54, %p55
      %p57 = scmp.ne.s32.totalorder %s48, %s49
      %p58 = scmp.eq.s32.totalorder %s17, 0
      %p59 = por %p57, %p58
      %p60 = scmp.ne.s32.totalorder %s48, %s49
      %p61 = scmp.eq.s32.totalorder %s18, 1
      %p62 = por %p60, %p61
      %p64 = scmp.ne.s32.totalorder %s49, %s63
      %p65 = scmp.eq.s32.totalorder %s18, 0
      %p66 = por %p64, %p65
      %s68 = sadd.s32 %s67, 1
      %p71 = scmp.eq.s32.totalorder %s12, 1
      %p72 = scmp.ne.s32.totalorder %s67, %s69
      %p73 = scmp.eq.s32.totalorder %s12, 0
      %p74 = por %p72, %p73
      %p75 = scmp.ne.s32.totalorder %s67, %s69
      %p76 = scmp.eq.s32.totalorder %s17, 1
      %p77 = por %p75, %p76
      %p78 = scmp.ne.s32.totalorder %s69, %s70
      %p79 = scmp.eq.s32.totalorder %s17, 0
      %p80 = por %p78, %p79
      %p81 = scmp.ne.s32.totalorder %s69, %s70
      %p82 = scmp.eq.s32.totalorder %s18, 1
      %p83 = por %p81, %p82
      %p85 = scmp.ne.s32.totalorder %s70, %s84
      %p86 = scmp.eq.s32.totalorder %s18, 0
      %p87 = por %p85, %p86
      %s88 = ssub.s32 %s12, %s19
      %p89 = scmp.eq.s32.totalorder %s88, 0
      %s91 = sadd.s32 %s90, 1
      %s92 = scalar_select %p89, %s90, %s91
      %p95 = pneg %p89
      %p96 = scmp.eq.s32.totalorder %s12, 1
      %p97 = por %p95, %p96
      %p98 = scmp.ne.s32.totalorder %s90, %s93
      %p99 = scmp.eq.s32.totalorder %s12, 0
      %p100 = por %p98, %p99
      %p101 = scmp.ne.s32.totalorder %s90, %s93
      %p102 = scmp.eq.s32.totalorder %s17, 1
      %p103 = por %p101, %p102
      %p104 = scmp.ne.s32.totalorder %s93, %s94
      %p105 = scmp.eq.s32.totalorder %s17, 0
      %p106 = por %p104, %p105
      %p107 = scmp.ne.s32.totalorder %s93, %s94
      %p108 = scmp.eq.s32.totalorder %s18, 1
      %p109 = por %p107, %p108
      %p111 = scmp.ne.s32.totalorder %s94, %s110
      %p112 = scmp.eq.s32.totalorder %s18, 0
      %p113 = por %p111, %p112
      %p114 = scmp.le.s32.totalorder 1, %s12
      %p115 = scmp.lt.s32.totalorder %s12, 3
      %p116 = pnand %p114, %p115
      %p117 = pneg %p116
      // Predicated region
      $region9: #{tpu_custom_call.1} parent=5 // pred_check
        _
      $region10: #{tpu_custom_call.1} parent=5 // pred_check_branch
        %119 = sbr.rel (%p116) target = $region12
      $region11: #{tpu_custom_call.1} parent=5 // pred_region
        %s120 = ssub.s32 %s12, 1
        // Predicated region
        $region13: #{tpu_custom_call.1} parent=11 // pred_check
          %p121 = pneg %p59
        $region14: #{tpu_custom_call.1} parent=11 // pred_check_branch
          %123 = sbr.rel (%p121) target = $region16
        $region15: #{tpu_custom_call.1} parent=11 // pred_region
          _
        $region16: #{tpu_custom_call.1} parent=11 // pred_fallthru
          _
        // Predicated region
        $region17: #{tpu_custom_call.1} parent=11 // pred_check
          %p124 = pneg %p80
        $region18: #{tpu_custom_call.1} parent=11 // pred_check_branch
          %126 = sbr.rel (%p124) target = $region20
        $region19: #{tpu_custom_call.1} parent=11 // pred_region
          _
        $region20: #{tpu_custom_call.1} parent=11 // pred_fallthru
          _
      $region12: #{tpu_custom_call.1} parent=5 // pred_fallthru
        _
      %p127 = scmp.lt.s32.totalorder %s12, 2
      // Predicated region
      $region21: #{tpu_custom_call.1} parent=5 // pred_check
        %p128 = pneg %p127
      $region22: #{tpu_custom_call.1} parent=5 // pred_check_branch
        %130 = sbr.rel (%p128) target = $region24
      $region23: #{tpu_custom_call.1} parent=5 // pred_region
        // Predicated region
        $region25: #{tpu_custom_call.1} parent=23 // pred_check
          %p131 = pneg %p32
        $region26: #{tpu_custom_call.1} parent=23 // pred_check_branch
          %133 = sbr.rel (%p131) target = $region28
        $region27: #{tpu_custom_call.1} parent=23 // pred_region
          %s134 = smul.u32 13, %s12
          %p135 = scmp.lt.s32.totalorder %s134, 25
          %s136 = scalar_select %p135, %s134, 25
          %s137 = smul.addr %s136, 8
          %s138 = scalar_lea.vmem %s0, %s137
          %s139 = smul.u32 13, %s12
        $region28: #{tpu_custom_call.1} parent=23 // pred_fallthru
          _
      $region24: #{tpu_custom_call.1} parent=5 // pred_fallthru
        _
      %p140 = scmp.le.s32.totalorder 1, %s12
      %p141 = scmp.lt.s32.totalorder %s12, 3
      %p142 = pnand %p140, %p141
      %p143 = pneg %p142
      // Predicated region
      $region29: #{tpu_custom_call.1} parent=5 // pred_check
        _
      $region30: #{tpu_custom_call.1} parent=5 // pred_check_branch
        %145 = sbr.rel (%p142) target = $region32
      $region31: #{tpu_custom_call.1} parent=5 // pred_region
        %s146 = ssub.s32 %s12, 1
        %s147 = smul.u32 13, %s17
        %p148 = scmp.lt.s32.totalorder %s147, 25
        %s149 = scalar_select %p148, %s147, 25
        %s150 = smul.addr %s149, 8
        %s151 = scalar_lea.vmem %s0, %s150
        %p152 = pneg %p38
        %p153 = pneg %p35
        %p154 = pneg %p59
        %p155 = pneg %p56
        %p156 = pneg %p80
        %p157 = pneg %p77
        %p158 = pneg %p106
        %p159 = pneg %p103
        %s160 = sand.u32 %s93, 1
        %s161 = scalar_lea.sflag [#allocation3], %s160
        %s162 = sand.u32 %s93, 1
        %s163 = smul.addr %s162, 104
        %s164 = scalar_lea.vmem [#allocation2], %s163
        %s165 = smul.u32 13, %s17
        %p166 = scmp.lt.s32.totalorder %s165, 25
        %s167 = scalar_select %p166, %s165, 25
        %s168 = smul.addr %s167, 8
        %s169 = scalar_lea.vmem %s0, %s168
        %s170 = smul.u32 13, %s17
        %s171 = smul.u32 13, %s17
        %v172 = vld [vmem:[%s169] sm:$0xff]
        %v173 = vld [vmem:[%s169 + $0x8] sm:$0xff]
        %v174 = vld [vmem:[%s169 + $0x10] sm:$0xff]
        %v175 = vld [vmem:[%s169 + $0x18] sm:$0xff]
        %v176 = vld [vmem:[%s169 + $0x20] sm:$0xff]
        %v177 = vld [vmem:[%s169 + $0x28] sm:$0xff]
        %v178 = vld [vmem:[%s169 + $0x30] sm:$0xff]
        %v179 = vld [vmem:[%s169 + $0x38] sm:$0xff]
        %v180 = vld [vmem:[%s169 + $0x40] sm:$0xff]
        %v181 = vld [vmem:[%s169 + $0x48] sm:$0xff]
        %v182 = vld [vmem:[%s169 + $0x50] sm:$0xff]
        %v183 = vld [vmem:[%s169 + $0x58] sm:$0xff]
        %v184 = vld [vmem:[%s169 + $0x60] sm:$0xff]
        %v185 = vld [vmem:[%s1] sm:$0xff]
        %v186 = vld [vmem:[%s1 + $0x8] sm:$0xff]
        %v187 = vld [vmem:[%s1 + $0x10] sm:$0xff]
        %v188 = vld [vmem:[%s1 + $0x18] sm:$0xff]
        %v189 = vld [vmem:[%s1 + $0x20] sm:$0xff]
        %v190 = vld [vmem:[%s1 + $0x28] sm:$0xff]
        %v191 = vld [vmem:[%s1 + $0x30] sm:$0xff]
        %v192 = vld [vmem:[%s1 + $0x38] sm:$0xff]
        %v193 = vld [vmem:[%s1 + $0x40] sm:$0xff]
        %v194 = vld [vmem:[%s1 + $0x48] sm:$0xff]
        %v195 = vld [vmem:[%s1 + $0x50] sm:$0xff]
        %v196 = vld [vmem:[%s1 + $0x58] sm:$0xff]
        %v197 = vld [vmem:[%s1 + $0x60] sm:$0xff]
        %v198 = vld [vmem:[%s1 + $0x68] sm:$0xff]
        %v199 = vld [vmem:[%s1 + $0x70] sm:$0xff]
        %v200 = vld [vmem:[%s1 + $0x78] sm:$0xff]
        %v201 = vld [vmem:[%s2] sm:$0x1]
        %v203 = vperm.slane %v201, 0
        %vm205 = vcmask 261120
        %v207 = vsel %vm205, %v172, 0
        %v210 = vsel %vm205, %v173, 0
        %v213 = vsel %vm205, %v174, 0
        %v216 = vsel %vm205, %v175, 0
        %v219 = vsel %vm205, %v176, 0
        %v222 = vsel %vm205, %v177, 0
        %v225 = vsel %vm205, %v178, 0
        %v228 = vsel %vm205, %v179, 0
        %v231 = vsel %vm205, %v180, 0
        %v234 = vsel %vm205, %v181, 0
        %v237 = vsel %vm205, %v182, 0
        %v240 = vsel %vm205, %v183, 0
        %v243 = vsel %vm205, %v184, 0
        %v246 = vsel %vm205, %v185, 0
        %v249 = vsel %vm205, %v186, 0
        %v252 = vsel %vm205, %v187, 0
        %v255 = vsel %vm205, %v188, 0
        %v258 = vsel %vm205, %v189, 0
        %v261 = vsel %vm205, %v190, 0
        %v264 = vsel %vm205, %v191, 0
        %v267 = vsel %vm205, %v192, 0
        %v270 = vsel %vm205, %v193, 0
        %v273 = vsel %vm205, %v194, 0
        %v276 = vsel %vm205, %v195, 0
        %v279 = vsel %vm205, %v196, 0
        %v282 = vsel %vm205, %v197, 0
        %v285 = vsel %vm205, %v198, 0
        %v288 = vsel %vm205, %v199, 0
        %v291 = vsel %vm205, %v200, 0
        %293 = vmatpush.xpose.msra.mxu0 %v291
        %294 = vmatpush.xpose.msra.mxu0 %v288
        %295 = vmatpush.xpose.msra.mxu0 %v285
        %296 = vmatpush.xpose.msra.mxu0 %v282
        %297 = vmatpush.xpose.msra.mxu0 %v279
        %298 = vmatpush.xpose.msra.mxu0 %v276
        %299 = vmatpush.xpose.msra.mxu0 %v273
        %300 = vmatpush.xpose.msra.mxu0 %v270
        %301 = vmatpush.xpose.msra.mxu0 %v267
        %302 = vmatpush.xpose.msra.mxu0 %v264
        %303 = vmatpush.xpose.msra.mxu0 %v261
        %304 = vmatpush.xpose.msra.mxu0 %v258
        %305 = vmatpush.xpose.msra.mxu0 %v255
        %306 = vmatpush.xpose.msra.mxu0 %v252
        %307 = vmatpush.xpose.msra.mxu0 %v249
        %308 = vmatpush.xpose.msra.mxu0 %v246
        %309 = vmatmul.f32.gmra.mxu0 %v207
        %v310 = vpop.f32.mrf.mxu0
        %v311 = vadd.f32 %v203, %v310
        %312 = vmatmul.f32.gmra.mxu0 %v210
        %v313 = vpop.f32.mrf.mxu0
        %v314 = vadd.f32 %v203, %v313
        %315 = vmatmul.f32.gmra.mxu0 %v213
        %v316 = vpop.f32.mrf.mxu0
        %v317 = vadd.f32 %v203, %v316
        %318 = vmatmul.f32.gmra.mxu0 %v216
        %v319 = vpop.f32.mrf.mxu0
        %v320 = vadd.f32 %v203, %v319
        %321 = vmatmul.f32.gmra.mxu0 %v219
        %v322 = vpop.f32.mrf.mxu0
        %v323 = vadd.f32 %v203, %v322
        %324 = vmatmul.f32.gmra.mxu0 %v222
        %v325 = vpop.f32.mrf.mxu0
        %v326 = vadd.f32 %v203, %v325
        %327 = vmatmul.f32.gmra.mxu0 %v225
        %v328 = vpop.f32.mrf.mxu0
        %v329 = vadd.f32 %v203, %v328
        %330 = vmatmul.f32.gmra.mxu0 %v228
        %v331 = vpop.f32.mrf.mxu0
        %v332 = vadd.f32 %v203, %v331
        %333 = vmatmul.f32.gmra.mxu0 %v231
        %v334 = vpop.f32.mrf.mxu0
        %v335 = vadd.f32 %v203, %v334
        %336 = vmatmul.f32.gmra.mxu0 %v234
        %v337 = vpop.f32.mrf.mxu0
        %v338 = vadd.f32 %v203, %v337
        %339 = vmatmul.f32.gmra.mxu0 %v237
        %v340 = vpop.f32.mrf.mxu0
        %v341 = vadd.f32 %v203, %v340
        %342 = vmatmul.f32.gmra.mxu0 %v240
        %v343 = vpop.f32.mrf.mxu0
        %v344 = vadd.f32 %v203, %v343
        %345 = vmatmul.f32.gmra.mxu0 %v243
        %v346 = vpop.f32.mrf.mxu0
        %v347 = vadd.f32 %v203, %v346
        %348 = vdwg.mxu0
        %v349 = vmul.f32 %v311, 30.0
        %v350 = vmul.f32 %v314, 30.0
        %v351 = vmul.f32 %v317, 30.0
        %v352 = vmul.f32 %v320, 30.0
        %v353 = vmul.f32 %v323, 30.0
        %v354 = vmul.f32 %v326, 30.0
        %v355 = vmul.f32 %v329, 30.0
        %v356 = vmul.f32 %v332, 30.0
        %v357 = vmul.f32 %v335, 30.0
        %v358 = vmul.f32 %v338, 30.0
        %v359 = vmul.f32 %v341, 30.0
        %v360 = vmul.f32 %v344, 30.0
        %v361 = vmul.f32 %v347, 30.0
        %v362 = vand.u32 2147483647, %v349
        %vm363 = vcmp.le.f32.partialorder %v362, 0.7853982
        %vm364 = vcmp.lt.s32.totalorder %v349, 0
        %v365 = vand.u32 %v349, 2139095040
        %v366 = vshrl.u32 %v365, 23
        %v367 = vsub.s32 %v366, 127
        %v368 = vand.u32 2147483647, %v349
        %v369 = vand.u32 %v368, 8388607
        %v370 = vor.u32 %v369, 8388608
        %v371 = vsub.s32 0, %v370
        %v372 = vadd.s32 %v367, 1
        %vm373 = vcmp.gt.s32.totalorder %v372, 0
        %v374 = vsel %vm373, %v372, 0
        %v375 = vshrl.u32 %v374, 5
        %v376 = vand.u32 %v374, 31
        %v377 = vsub.s32 32, %v376
        %v378 = vshrl.u32 683565275, %v377
        %v379 = vshll.u32 683565275, %v376
        %v380 = vshrl.u32 2475754826, %v377
        %v381 = vor.u32 %v379, %v380
        %v382 = vshll.u32 2475754826, %v376
        %v383 = vshrl.u32 2131351028, %v377
        %v384 = vor.u32 %v382, %v383
        %v385 = vshll.u32 2131351028, %v376
        %v386 = vshrl.u32 2102212464, %v377
        %v387 = vor.u32 %v385, %v386
        %v388 = vshll.u32 2102212464, %v376
        %v389 = vshrl.u32 920167782, %v377
        %v390 = vor.u32 %v388, %v389
        %v391 = vshll.u32 920167782, %v376
        %v392 = vshrl.u32 1326507024, %v377
        %v393 = vor.u32 %v391, %v392
        %vm394 = vcmp.lt.s32.totalorder %v375, 1
        %vm395 = vcmp.lt.s32.totalorder %v375, 2
        %vm396 = vcmp.lt.s32.totalorder %v375, 3
        %vm397 = vcmp.lt.s32.totalorder %v375, 4
        %v398 = vsel %vm394, %v378, %v381
        %v399 = vsel %vm397, %v387, 2102212464
        %v400 = vsel %vm396, %v384, %v399
        %v401 = vsel %vm395, %v398, %v400
        %v402 = vsel %vm394, %v381, %v384
        %v403 = vsel %vm397, %v390, 920167782
        %v404 = vsel %vm396, %v387, %v403
        %v405 = vsel %vm395, %v402, %v404
        %v406 = vsel %vm394, %v384, %v387
        %v407 = vsel %vm397, %v393, 1326507024
        %v408 = vsel %vm396, %v390, %v407
        %v409 = vsel %vm395, %v406, %v408
        %v410 = vshll.u32 %v370, 8
        %v411 = vand.u32 %v410, 65535
        %v412 = vshrl.u32 %v410, 16
        %v413 = vand.u32 %v409, 65535
        %v414 = vshrl.u32 %v409, 16
        %v415 = vmul.u32 %v411, %v413
        %v416 = vmul.u32 %v411, %v414
        %v417 = vmul.u32 %v412, %v413
        %v418 = vmul.u32 %v412, %v414
        %v419 = vshll.u32 %v416, 16
        %v420 = vshrl.u32 %v416, 16
        %v421 = vshll.u32 %v417, 16
        %v422 = vshrl.u32 %v417, 16
        %vm423 = vc.u32 %v415, %v419
        %v424 = vsel %vm423, 1, 0
        %v425 = vadd.s32 %v415, %v419
        %v426 = vadd.s32 %v418, %v424
        %vm427 = vc.u32 %v425, %v421
        %v428 = vsel %vm427, 1, 0
        %v429 = vadd.s32 %v425, %v421
        %v430 = vadd.s32 %v426, %v428
        %v431 = vadd.s32 %v430, %v420
        %v432 = vadd.s32 %v431, %v422
        %v433 = vand.u32 %v410, 65535
        %v434 = vshrl.u32 %v410, 16
        %v435 = vand.u32 %v405, 65535
        %v436 = vshrl.u32 %v405, 16
        %v437 = vmul.u32 %v433, %v435
        %v438 = vmul.u32 %v433, %v436
        %v439 = vmul.u32 %v434, %v435
        %v440 = vmul.u32 %v434, %v436
        %v441 = vshll.u32 %v438, 16
        %v442 = vshrl.u32 %v438, 16
        %v443 = vshll.u32 %v439, 16
        %v444 = vshrl.u32 %v439, 16
        %vm445 = vc.u32 %v437, %v441
        %v446 = vsel %vm445, 1, 0
        %v447 = vadd.s32 %v437, %v441
        %v448 = vadd.s32 %v440, %v446
        %vm449 = vc.u32 %v447, %v443
        %v450 = vsel %vm449, 1, 0
        %v451 = vadd.s32 %v447, %v443
        %v452 = vadd.s32 %v448, %v450
        %v453 = vadd.s32 %v452, %v442
        %v454 = vadd.s32 %v453, %v444
        %v455 = vmul.u32 %v410, %v401
        %v456 = vadd.s32 %v432, %v451
        %vm457 = vc.u32 %v432, %v451
        %v458 = vadd.s32 %v454, 1
        %v459 = vsel %vm457, %v458, %v454
        %v460 = vadd.s32 %v455, %v459
        %v461 = vadd.s32 %v460, 536870912
        %v462 = vshrl.u32 %v461, 30
        %v463 = vshll.u32 %v462, 30
        %v464 = vsub.s32 %v460, %v463
        %vm465 = vcmp.lt.s32.totalorder %v464, 0
        %v466 = vsub.s32 0, %v464
        %v467 = vsel %vm465, %v466, %v464
        %v468 = vclz %v467
        %v469 = vsub.s32 %v468, 2
        %vm470 = vcmp.gt.s32.totalorder 0, %v469
        %v471 = vsel %vm470, 0, %v469
        %v472 = vsub.s32 32, %v471
        %v473 = vshll.u32 %v464, %v471
        %v474 = vshrl.u32 %v456, %v472
        %v475 = vor.u32 %v473, %v474
        %v476 = vsub.s32 4294967266, %v471
        %v477 = vadd.s32 %v476, 127
        %v478 = vshll.u32 %v477, 23
        %v479 = vor.u32 4788187, %v478
        %v480 = vand.u32 2147483647, %v479
        %v482 = vcvt.s32.f32 %v475
        %v483 = vmul.f32 %v482, %v480
        %v484 = vxor.u32 %v483, 2147483648
        %v485 = vsel %vm364, %v484, %v483
        %v486 = vsub.s32 4, %v462
        %v487 = vsel %vm364, %v486, %v462
        %v488 = vsel %vm363, %v349, %v485
        %v489 = vsel %vm363, 0, %v487
        %v490 = vmul.f32 %v488, %v488
        %v491 = vmul.f32 %v490, -0.001358992
        %v492 = vadd.f32 %v491, 0.041655596
        %v493 = vmul.f32 %v490, %v492
        %v494 = vadd.f32 %v493, -0.4999988
        %v495 = vmul.f32 %v490, %v494
        %v496 = vadd.f32 1.0, %v495
        %v497 = vmul.f32 %v488, %v488
        %v498 = vmul.f32 %v497, -0.00019511016
        %v499 = vadd.f32 %v498, 0.008332121
        %v500 = vmul.f32 %v497, %v499
        %v501 = vadd.f32 %v500, -0.16666654
        %v502 = vmul.f32 %v497, %v501
        %v503 = vadd.f32 %v502, 1.0
        %v504 = vmul.f32 %v503, %v488
        %vm505 = vweird.f32 %v349
        %v506 = vadd.s32 %v489, 3
        %v507 = vand.u32 %v506, 3
        %vm508 = vcmp.lt.s32.totalorder %v507, 2
        %vm509 = vcmp.eq.s32.totalorder %v507, 0
        %v510 = vxor.u32 %v504, 2147483648
        %v511 = vsel %vm509, %v496, %v510
        %vm512 = vcmp.eq.s32.totalorder %v507, 2
        %v513 = vxor.u32 %v496, 2147483648
        %v514 = vsel %vm512, %v513, %v504
        %v515 = vsel %vm508, %v511, %v514
        %v516 = vsel %vm505, nan, %v515
        %v517 = vand.u32 2147483647, %v350
        %vm518 = vcmp.le.f32.partialorder %v517, 0.7853982
        %vm519 = vcmp.lt.s32.totalorder %v350, 0
        %v520 = vand.u32 %v350, 2139095040
        %v521 = vshrl.u32 %v520, 23
        %v522 = vsub.s32 %v521, 127
        %v523 = vand.u32 2147483647, %v350
        %v524 = vand.u32 %v523, 8388607
        %v525 = vor.u32 %v524, 8388608
        %v526 = vsub.s32 0, %v525
        %v527 = vadd.s32 %v522, 1
        %vm528 = vcmp.gt.s32.totalorder %v527, 0
        %v529 = vsel %vm528, %v527, 0
        %v530 = vshrl.u32 %v529, 5
        %v531 = vand.u32 %v529, 31
        %v532 = vsub.s32 32, %v531
        %v533 = vshrl.u32 683565275, %v532
        %v534 = vshll.u32 683565275, %v531
        %v535 = vshrl.u32 2475754826, %v532
        %v536 = vor.u32 %v534, %v535
        %v537 = vshll.u32 2475754826, %v531
        %v538 = vshrl.u32 2131351028, %v532
        %v539 = vor.u32 %v537, %v538
        %v540 = vshll.u32 2131351028, %v531
        %v541 = vshrl.u32 2102212464, %v532
        %v542 = vor.u32 %v540, %v541
        %v543 = vshll.u32 2102212464, %v531
        %v544 = vshrl.u32 920167782, %v532
        %v545 = vor.u32 %v543, %v544
        %v546 = vshll.u32 920167782, %v531
        %v547 = vshrl.u32 1326507024, %v532
        %v548 = vor.u32 %v546, %v547
        %vm549 = vcmp.lt.s32.totalorder %v530, 1
        %vm550 = vcmp.lt.s32.totalorder %v530, 2
        %vm551 = vcmp.lt.s32.totalorder %v530, 3
        %vm552 = vcmp.lt.s32.totalorder %v530, 4
        %v553 = vsel %vm549, %v533, %v536
        %v554 = vsel %vm552, %v542, 2102212464
        %v555 = vsel %vm551, %v539, %v554
        %v556 = vsel %vm550, %v553, %v555
        %v557 = vsel %vm549, %v536, %v539
        %v558 = vsel %vm552, %v545, 920167782
        %v559 = vsel %vm551, %v542, %v558
        %v560 = vsel %vm550, %v557, %v559
        %v561 = vsel %vm549, %v539, %v542
        %v562 = vsel %vm552, %v548, 1326507024
        %v563 = vsel %vm551, %v545, %v562
        %v564 = vsel %vm550, %v561, %v563
        %v565 = vshll.u32 %v525, 8
        %v566 = vand.u32 %v565, 65535
        %v567 = vshrl.u32 %v565, 16
        %v568 = vand.u32 %v564, 65535
        %v569 = vshrl.u32 %v564, 16
        %v570 = vmul.u32 %v566, %v568
        %v571 = vmul.u32 %v566, %v569
        %v572 = vmul.u32 %v567, %v568
        %v573 = vmul.u32 %v567, %v569
        %v574 = vshll.u32 %v571, 16
        %v575 = vshrl.u32 %v571, 16
        %v576 = vshll.u32 %v572, 16
        %v577 = vshrl.u32 %v572, 16
        %vm578 = vc.u32 %v570, %v574
        %v579 = vsel %vm578, 1, 0
        %v580 = vadd.s32 %v570, %v574
        %v581 = vadd.s32 %v573, %v579
        %vm582 = vc.u32 %v580, %v576
        %v583 = vsel %vm582, 1, 0
        %v584 = vadd.s32 %v580, %v576
        %v585 = vadd.s32 %v581, %v583
        %v586 = vadd.s32 %v585, %v575
        %v587 = vadd.s32 %v586, %v577
        %v588 = vand.u32 %v565, 65535
        %v589 = vshrl.u32 %v565, 16
        %v590 = vand.u32 %v560, 65535
        %v591 = vshrl.u32 %v560, 16
        %v592 = vmul.u32 %v588, %v590
        %v593 = vmul.u32 %v588, %v591
        %v594 = vmul.u32 %v589, %v590
        %v595 = vmul.u32 %v589, %v591
        %v596 = vshll.u32 %v593, 16
        %v597 = vshrl.u32 %v593, 16
        %v598 = vshll.u32 %v594, 16
        %v599 = vshrl.u32 %v594, 16
        %vm600 = vc.u32 %v592, %v596
        %v601 = vsel %vm600, 1, 0
        %v602 = vadd.s32 %v592, %v596
        %v603 = vadd.s32 %v595, %v601
        %vm604 = vc.u32 %v602, %v598
        %v605 = vsel %vm604, 1, 0
        %v606 = vadd.s32 %v602, %v598
        %v607 = vadd.s32 %v603, %v605
        %v608 = vadd.s32 %v607, %v597
        %v609 = vadd.s32 %v608, %v599
        %v610 = vmul.u32 %v565, %v556
        %v611 = vadd.s32 %v587, %v606
        %vm612 = vc.u32 %v587, %v606
        %v613 = vadd.s32 %v609, 1
        %v614 = vsel %vm612, %v613, %v609
        %v615 = vadd.s32 %v610, %v614
        %v616 = vadd.s32 %v615, 536870912
        %v617 = vshrl.u32 %v616, 30
        %v618 = vshll.u32 %v617, 30
        %v619 = vsub.s32 %v615, %v618
        %vm620 = vcmp.lt.s32.totalorder %v619, 0
        %v621 = vsub.s32 0, %v619
        %v622 = vsel %vm620, %v621, %v619
        %v623 = vclz %v622
        %v624 = vsub.s32 %v623, 2
        %vm625 = vcmp.gt.s32.totalorder 0, %v624
        %v626 = vsel %vm625, 0, %v624
        %v627 = vsub.s32 32, %v626
        %v628 = vshll.u32 %v619, %v626
        %v629 = vshrl.u32 %v611, %v627
        %v630 = vor.u32 %v628, %v629
        %v631 = vsub.s32 4294967266, %v626
        %v632 = vadd.s32 %v631, 127
        %v633 = vshll.u32 %v632, 23
        %v634 = vor.u32 4788187, %v633
        %v635 = vand.u32 2147483647, %v634
        %v637 = vcvt.s32.f32 %v630
        %v638 = vmul.f32 %v637, %v635
        %v639 = vxor.u32 %v638, 2147483648
        %v640 = vsel %vm519, %v639, %v638
        %v641 = vsub.s32 4, %v617
        %v642 = vsel %vm519, %v641, %v617
        %v643 = vsel %vm518, %v350, %v640
        %v644 = vsel %vm518, 0, %v642
        %v645 = vmul.f32 %v643, %v643
        %v646 = vmul.f32 %v645, -0.001358992
        %v647 = vadd.f32 %v646, 0.041655596
        %v648 = vmul.f32 %v645, %v647
        %v649 = vadd.f32 %v648, -0.4999988
        %v650 = vmul.f32 %v645, %v649
        %v651 = vadd.f32 1.0, %v650
        %v652 = vmul.f32 %v643, %v643
        %v653 = vmul.f32 %v652, -0.00019511016
        %v654 = vadd.f32 %v653, 0.008332121
        %v655 = vmul.f32 %v652, %v654
        %v656 = vadd.f32 %v655, -0.16666654
        %v657 = vmul.f32 %v652, %v656
        %v658 = vadd.f32 %v657, 1.0
        %v659 = vmul.f32 %v658, %v643
        %vm660 = vweird.f32 %v350
        %v661 = vadd.s32 %v644, 3
        %v662 = vand.u32 %v661, 3
        %vm663 = vcmp.lt.s32.totalorder %v662, 2
        %vm664 = vcmp.eq.s32.totalorder %v662, 0
        %v665 = vxor.u32 %v659, 2147483648
        %v666 = vsel %vm664, %v651, %v665
        %vm667 = vcmp.eq.s32.totalorder %v662, 2
        %v668 = vxor.u32 %v651, 2147483648
        %v669 = vsel %vm667, %v668, %v659
        %v670 = vsel %vm663, %v666, %v669
        %v671 = vsel %vm660, nan, %v670
        %v672 = vand.u32 2147483647, %v351
        %vm673 = vcmp.le.f32.partialorder %v672, 0.7853982
        %vm674 = vcmp.lt.s32.totalorder %v351, 0
        %v675 = vand.u32 %v351, 2139095040
        %v676 = vshrl.u32 %v675, 23
        %v677 = vsub.s32 %v676, 127
        %v678 = vand.u32 2147483647, %v351
        %v679 = vand.u32 %v678, 8388607
        %v680 = vor.u32 %v679, 8388608
        %v681 = vsub.s32 0, %v680
        %v682 = vadd.s32 %v677, 1
        %vm683 = vcmp.gt.s32.totalorder %v682, 0
        %v684 = vsel %vm683, %v682, 0
        %v685 = vshrl.u32 %v684, 5
        %v686 = vand.u32 %v684, 31
        %v687 = vsub.s32 32, %v686
        %v688 = vshrl.u32 683565275, %v687
        %v689 = vshll.u32 683565275, %v686
        %v690 = vshrl.u32 2475754826, %v687
        %v691 = vor.u32 %v689, %v690
        %v692 = vshll.u32 2475754826, %v686
        %v693 = vshrl.u32 2131351028, %v687
        %v694 = vor.u32 %v692, %v693
        %v695 = vshll.u32 2131351028, %v686
        %v696 = vshrl.u32 2102212464, %v687
        %v697 = vor.u32 %v695, %v696
        %v698 = vshll.u32 2102212464, %v686
        %v699 = vshrl.u32 920167782, %v687
        %v700 = vor.u32 %v698, %v699
        %v701 = vshll.u32 920167782, %v686
        %v702 = vshrl.u32 1326507024, %v687
        %v703 = vor.u32 %v701, %v702
        %vm704 = vcmp.lt.s32.totalorder %v685, 1
        %vm705 = vcmp.lt.s32.totalorder %v685, 2
        %vm706 = vcmp.lt.s32.totalorder %v685, 3
        %vm707 = vcmp.lt.s32.totalorder %v685, 4
        %v708 = vsel %vm704, %v688, %v691
        %v709 = vsel %vm707, %v697, 2102212464
        %v710 = vsel %vm706, %v694, %v709
        %v711 = vsel %vm705, %v708, %v710
        %v712 = vsel %vm704, %v691, %v694
        %v713 = vsel %vm707, %v700, 920167782
        %v714 = vsel %vm706, %v697, %v713
        %v715 = vsel %vm705, %v712, %v714
        %v716 = vsel %vm704, %v694, %v697
        %v717 = vsel %vm707, %v703, 1326507024
        %v718 = vsel %vm706, %v700, %v717
        %v719 = vsel %vm705, %v716, %v718
        %v720 = vshll.u32 %v680, 8
        %v721 = vand.u32 %v720, 65535
        %v722 = vshrl.u32 %v720, 16
        %v723 = vand.u32 %v719, 65535
        %v724 = vshrl.u32 %v719, 16
        %v725 = vmul.u32 %v721, %v723
        %v726 = vmul.u32 %v721, %v724
        %v727 = vmul.u32 %v722, %v723
        %v728 = vmul.u32 %v722, %v724
        %v729 = vshll.u32 %v726, 16
        %v730 = vshrl.u32 %v726, 16
        %v731 = vshll.u32 %v727, 16
        %v732 = vshrl.u32 %v727, 16
        %vm733 = vc.u32 %v725, %v729
        %v734 = vsel %vm733, 1, 0
        %v735 = vadd.s32 %v725, %v729
        %v736 = vadd.s32 %v728, %v734
        %vm737 = vc.u32 %v735, %v731
        %v738 = vsel %vm737, 1, 0
        %v739 = vadd.s32 %v735, %v731
        %v740 = vadd.s32 %v736, %v738
        %v741 = vadd.s32 %v740, %v730
        %v742 = vadd.s32 %v741, %v732
        %v743 = vand.u32 %v720, 65535
        %v744 = vshrl.u32 %v720, 16
        %v745 = vand.u32 %v715, 65535
        %v746 = vshrl.u32 %v715, 16
        %v747 = vmul.u32 %v743, %v745
        %v748 = vmul.u32 %v743, %v746
        %v749 = vmul.u32 %v744, %v745
        %v750 = vmul.u32 %v744, %v746
        %v751 = vshll.u32 %v748, 16
        %v752 = vshrl.u32 %v748, 16
        %v753 = vshll.u32 %v749, 16
        %v754 = vshrl.u32 %v749, 16
        %vm755 = vc.u32 %v747, %v751
        %v756 = vsel %vm755, 1, 0
        %v757 = vadd.s32 %v747, %v751
        %v758 = vadd.s32 %v750, %v756
        %vm759 = vc.u32 %v757, %v753
        %v760 = vsel %vm759, 1, 0
        %v761 = vadd.s32 %v757, %v753
        %v762 = vadd.s32 %v758, %v760
        %v763 = vadd.s32 %v762, %v752
        %v764 = vadd.s32 %v763, %v754
        %v765 = vmul.u32 %v720, %v711
        %v766 = vadd.s32 %v742, %v761
        %vm767 = vc.u32 %v742, %v761
        %v768 = vadd.s32 %v764, 1
        %v769 = vsel %vm767, %v768, %v764
        %v770 = vadd.s32 %v765, %v769
        %v771 = vadd.s32 %v770, 536870912
        %v772 = vshrl.u32 %v771, 30
        %v773 = vshll.u32 %v772, 30
        %v774 = vsub.s32 %v770, %v773
        %vm775 = vcmp.lt.s32.totalorder %v774, 0
        %v776 = vsub.s32 0, %v774
        %v777 = vsel %vm775, %v776, %v774
        %v778 = vclz %v777
        %v779 = vsub.s32 %v778, 2
        %vm780 = vcmp.gt.s32.totalorder 0, %v779
        %v781 = vsel %vm780, 0, %v779
        %v782 = vsub.s32 32, %v781
        %v783 = vshll.u32 %v774, %v781
        %v784 = vshrl.u32 %v766, %v782
        %v785 = vor.u32 %v783, %v784
        %v786 = vsub.s32 4294967266, %v781
        %v787 = vadd.s32 %v786, 127
        %v788 = vshll.u32 %v787, 23
        %v789 = vor.u32 4788187, %v788
        %v790 = vand.u32 2147483647, %v789
        %v792 = vcvt.s32.f32 %v785
        %v793 = vmul.f32 %v792, %v790
        %v794 = vxor.u32 %v793, 2147483648
        %v795 = vsel %vm674, %v794, %v793
        %v796 = vsub.s32 4, %v772
        %v797 = vsel %vm674, %v796, %v772
        %v798 = vsel %vm673, %v351, %v795
        %v799 = vsel %vm673, 0, %v797
        %v800 = vmul.f32 %v798, %v798
        %v801 = vmul.f32 %v800, -0.001358992
        %v802 = vadd.f32 %v801, 0.041655596
        %v803 = vmul.f32 %v800, %v802
        %v804 = vadd.f32 %v803, -0.4999988
        %v805 = vmul.f32 %v800, %v804
        %v806 = vadd.f32 1.0, %v805
        %v807 = vmul.f32 %v798, %v798
        %v808 = vmul.f32 %v807, -0.00019511016
        %v809 = vadd.f32 %v808, 0.008332121
        %v810 = vmul.f32 %v807, %v809
        %v811 = vadd.f32 %v810, -0.16666654
        %v812 = vmul.f32 %v807, %v811
        %v813 = vadd.f32 %v812, 1.0
        %v814 = vmul.f32 %v813, %v798
        %vm815 = vweird.f32 %v351
        %v816 = vadd.s32 %v799, 3
        %v817 = vand.u32 %v816, 3
        %vm818 = vcmp.lt.s32.totalorder %v817, 2
        %vm819 = vcmp.eq.s32.totalorder %v817, 0
        %v820 = vxor.u32 %v814, 2147483648
        %v821 = vsel %vm819, %v806, %v820
        %vm822 = vcmp.eq.s32.totalorder %v817, 2
        %v823 = vxor.u32 %v806, 2147483648
        %v824 = vsel %vm822, %v823, %v814
        %v825 = vsel %vm818, %v821, %v824
        %v826 = vsel %vm815, nan, %v825
        %v827 = vand.u32 2147483647, %v352
        %vm828 = vcmp.le.f32.partialorder %v827, 0.7853982
        %vm829 = vcmp.lt.s32.totalorder %v352, 0
        %v830 = vand.u32 %v352, 2139095040
        %v831 = vshrl.u32 %v830, 23
        %v832 = vsub.s32 %v831, 127
        %v833 = vand.u32 2147483647, %v352
        %v834 = vand.u32 %v833, 8388607
        %v835 = vor.u32 %v834, 8388608
        %v836 = vsub.s32 0, %v835
        %v837 = vadd.s32 %v832, 1
        %vm838 = vcmp.gt.s32.totalorder %v837, 0
        %v839 = vsel %vm838, %v837, 0
        %v840 = vshrl.u32 %v839, 5
        %v841 = vand.u32 %v839, 31
        %v842 = vsub.s32 32, %v841
        %v843 = vshrl.u32 683565275, %v842
        %v844 = vshll.u32 683565275, %v841
        %v845 = vshrl.u32 2475754826, %v842
        %v846 = vor.u32 %v844, %v845
        %v847 = vshll.u32 2475754826, %v841
        %v848 = vshrl.u32 2131351028, %v842
        %v849 = vor.u32 %v847, %v848
        %v850 = vshll.u32 2131351028, %v841
        %v851 = vshrl.u32 2102212464, %v842
        %v852 = vor.u32 %v850, %v851
        %v853 = vshll.u32 2102212464, %v841
        %v854 = vshrl.u32 920167782, %v842
        %v855 = vor.u32 %v853, %v854
        %v856 = vshll.u32 920167782, %v841
        %v857 = vshrl.u32 1326507024, %v842
        %v858 = vor.u32 %v856, %v857
        %vm859 = vcmp.lt.s32.totalorder %v840, 1
        %vm860 = vcmp.lt.s32.totalorder %v840, 2
        %vm861 = vcmp.lt.s32.totalorder %v840, 3
        %vm862 = vcmp.lt.s32.totalorder %v840, 4
        %v863 = vsel %vm859, %v843, %v846
        %v864 = vsel %vm862, %v852, 2102212464
        %v865 = vsel %vm861, %v849, %v864
        %v866 = vsel %vm860, %v863, %v865
        %v867 = vsel %vm859, %v846, %v849
        %v868 = vsel %vm862, %v855, 920167782
        %v869 = vsel %vm861, %v852, %v868
        %v870 = vsel %vm860, %v867, %v869
        %v871 = vsel %vm859, %v849, %v852
        %v872 = vsel %vm862, %v858, 1326507024
        %v873 = vsel %vm861, %v855, %v872
        %v874 = vsel %vm860, %v871, %v873
        %v875 = vshll.u32 %v835, 8
        %v876 = vand.u32 %v875, 65535
        %v877 = vshrl.u32 %v875, 16
        %v878 = vand.u32 %v874, 65535
        %v879 = vshrl.u32 %v874, 16
        %v880 = vmul.u32 %v876, %v878
        %v881 = vmul.u32 %v876, %v879
        %v882 = vmul.u32 %v877, %v878
        %v883 = vmul.u32 %v877, %v879
        %v884 = vshll.u32 %v881, 16
        %v885 = vshrl.u32 %v881, 16
        %v886 = vshll.u32 %v882, 16
        %v887 = vshrl.u32 %v882, 16
        %vm888 = vc.u32 %v880, %v884
        %v889 = vsel %vm888, 1, 0
        %v890 = vadd.s32 %v880, %v884
        %v891 = vadd.s32 %v883, %v889
        %vm892 = vc.u32 %v890, %v886
        %v893 = vsel %vm892, 1, 0
        %v894 = vadd.s32 %v890, %v886
        %v895 = vadd.s32 %v891, %v893
        %v896 = vadd.s32 %v895, %v885
        %v897 = vadd.s32 %v896, %v887
        %v898 = vand.u32 %v875, 65535
        %v899 = vshrl.u32 %v875, 16
        %v900 = vand.u32 %v870, 65535
        %v901 = vshrl.u32 %v870, 16
        %v902 = vmul.u32 %v898, %v900
        %v903 = vmul.u32 %v898, %v901
        %v904 = vmul.u32 %v899, %v900
        %v905 = vmul.u32 %v899, %v901
        %v906 = vshll.u32 %v903, 16
        %v907 = vshrl.u32 %v903, 16
        %v908 = vshll.u32 %v904, 16
        %v909 = vshrl.u32 %v904, 16
        %vm910 = vc.u32 %v902, %v906
        %v911 = vsel %vm910, 1, 0
        %v912 = vadd.s32 %v902, %v906
        %v913 = vadd.s32 %v905, %v911
        %vm914 = vc.u32 %v912, %v908
        %v915 = vsel %vm914, 1, 0
        %v916 = vadd.s32 %v912, %v908
        %v917 = vadd.s32 %v913, %v915
        %v918 = vadd.s32 %v917, %v907
        %v919 = vadd.s32 %v918, %v909
        %v920 = vmul.u32 %v875, %v866
        %v921 = vadd.s32 %v897, %v916
        %vm922 = vc.u32 %v897, %v916
        %v923 = vadd.s32 %v919, 1
        %v924 = vsel %vm922, %v923, %v919
        %v925 = vadd.s32 %v920, %v924
        %v926 = vadd.s32 %v925, 536870912
        %v927 = vshrl.u32 %v926, 30
        %v928 = vshll.u32 %v927, 30
        %v929 = vsub.s32 %v925, %v928
        %vm930 = vcmp.lt.s32.totalorder %v929, 0
        %v931 = vsub.s32 0, %v929
        %v932 = vsel %vm930, %v931, %v929
        %v933 = vclz %v932
        %v934 = vsub.s32 %v933, 2
        %vm935 = vcmp.gt.s32.totalorder 0, %v934
        %v936 = vsel %vm935, 0, %v934
        %v937 = vsub.s32 32, %v936
        %v938 = vshll.u32 %v929, %v936
        %v939 = vshrl.u32 %v921, %v937
        %v940 = vor.u32 %v938, %v939
        %v941 = vsub.s32 4294967266, %v936
        %v942 = vadd.s32 %v941, 127
        %v943 = vshll.u32 %v942, 23
        %v944 = vor.u32 4788187, %v943
        %v945 = vand.u32 2147483647, %v944
        %v947 = vcvt.s32.f32 %v940
        %v948 = vmul.f32 %v947, %v945
        %v949 = vxor.u32 %v948, 2147483648
        %v950 = vsel %vm829, %v949, %v948
        %v951 = vsub.s32 4, %v927
        %v952 = vsel %vm829, %v951, %v927
        %v953 = vsel %vm828, %v352, %v950
        %v954 = vsel %vm828, 0, %v952
        %v955 = vmul.f32 %v953, %v953
        %v956 = vmul.f32 %v955, -0.001358992
        %v957 = vadd.f32 %v956, 0.041655596
        %v958 = vmul.f32 %v955, %v957
        %v959 = vadd.f32 %v958, -0.4999988
        %v960 = vmul.f32 %v955, %v959
        %v961 = vadd.f32 1.0, %v960
        %v962 = vmul.f32 %v953, %v953
        %v963 = vmul.f32 %v962, -0.00019511016
        %v964 = vadd.f32 %v963, 0.008332121
        %v965 = vmul.f32 %v962, %v964
        %v966 = vadd.f32 %v965, -0.16666654
        %v967 = vmul.f32 %v962, %v966
        %v968 = vadd.f32 %v967, 1.0
        %v969 = vmul.f32 %v968, %v953
        %vm970 = vweird.f32 %v352
        %v971 = vadd.s32 %v954, 3
        %v972 = vand.u32 %v971, 3
        %vm973 = vcmp.lt.s32.totalorder %v972, 2
        %vm974 = vcmp.eq.s32.totalorder %v972, 0
        %v975 = vxor.u32 %v969, 2147483648
        %v976 = vsel %vm974, %v961, %v975
        %vm977 = vcmp.eq.s32.totalorder %v972, 2
        %v978 = vxor.u32 %v961, 2147483648
        %v979 = vsel %vm977, %v978, %v969
        %v980 = vsel %vm973, %v976, %v979
        %v981 = vsel %vm970, nan, %v980
        %v982 = vand.u32 2147483647, %v353
        %vm983 = vcmp.le.f32.partialorder %v982, 0.7853982
        %vm984 = vcmp.lt.s32.totalorder %v353, 0
        %v985 = vand.u32 %v353, 2139095040
        %v986 = vshrl.u32 %v985, 23
        %v987 = vsub.s32 %v986, 127
        %v988 = vand.u32 2147483647, %v353
        %v989 = vand.u32 %v988, 8388607
        %v990 = vor.u32 %v989, 8388608
        %v991 = vsub.s32 0, %v990
        %v992 = vadd.s32 %v987, 1
        %vm993 = vcmp.gt.s32.totalorder %v992, 0
        %v994 = vsel %vm993, %v992, 0
        %v995 = vshrl.u32 %v994, 5
        %v996 = vand.u32 %v994, 31
        %v997 = vsub.s32 32, %v996
        %v998 = vshrl.u32 683565275, %v997
        %v999 = vshll.u32 683565275, %v996
        %v1000 = vshrl.u32 2475754826, %v997
        %v1001 = vor.u32 %v999, %v1000
        %v1002 = vshll.u32 2475754826, %v996
        %v1003 = vshrl.u32 2131351028, %v997
        %v1004 = vor.u32 %v1002, %v1003
        %v1005 = vshll.u32 2131351028, %v996
        %v1006 = vshrl.u32 2102212464, %v997
        %v1007 = vor.u32 %v1005, %v1006
        %v1008 = vshll.u32 2102212464, %v996
        %v1009 = vshrl.u32 920167782, %v997
        %v1010 = vor.u32 %v1008, %v1009
        %v1011 = vshll.u32 920167782, %v996
        %v1012 = vshrl.u32 1326507024, %v997
        %v1013 = vor.u32 %v1011, %v1012
        %vm1014 = vcmp.lt.s32.totalorder %v995, 1
        %vm1015 = vcmp.lt.s32.totalorder %v995, 2
        %vm1016 = vcmp.lt.s32.totalorder %v995, 3
        %vm1017 = vcmp.lt.s32.totalorder %v995, 4
        %v1018 = vsel %vm1014, %v998, %v1001
        %v1019 = vsel %vm1017, %v1007, 2102212464
        %v1020 = vsel %vm1016, %v1004, %v1019
        %v1021 = vsel %vm1015, %v1018, %v1020
        %v1022 = vsel %vm1014, %v1001, %v1004
        %v1023 = vsel %vm1017, %v1010, 920167782
        %v1024 = vsel %vm1016, %v1007, %v1023
        %v1025 = vsel %vm1015, %v1022, %v1024
        %v1026 = vsel %vm1014, %v1004, %v1007
        %v1027 = vsel %vm1017, %v1013, 1326507024
        %v1028 = vsel %vm1016, %v1010, %v1027
        %v1029 = vsel %vm1015, %v1026, %v1028
        %v1030 = vshll.u32 %v990, 8
        %v1031 = vand.u32 %v1030, 65535
        %v1032 = vshrl.u32 %v1030, 16
        %v1033 = vand.u32 %v1029, 65535
        %v1034 = vshrl.u32 %v1029, 16
        %v1035 = vmul.u32 %v1031, %v1033
        %v1036 = vmul.u32 %v1031, %v1034
        %v1037 = vmul.u32 %v1032, %v1033
        %v1038 = vmul.u32 %v1032, %v1034
        %v1039 = vshll.u32 %v1036, 16
        %v1040 = vshrl.u32 %v1036, 16
        %v1041 = vshll.u32 %v1037, 16
        %v1042 = vshrl.u32 %v1037, 16
        %vm1043 = vc.u32 %v1035, %v1039
        %v1044 = vsel %vm1043, 1, 0
        %v1045 = vadd.s32 %v1035, %v1039
        %v1046 = vadd.s32 %v1038, %v1044
        %vm1047 = vc.u32 %v1045, %v1041
        %v1048 = vsel %vm1047, 1, 0
        %v1049 = vadd.s32 %v1045, %v1041
        %v1050 = vadd.s32 %v1046, %v1048
        %v1051 = vadd.s32 %v1050, %v1040
        %v1052 = vadd.s32 %v1051, %v1042
        %v1053 = vand.u32 %v1030, 65535
        %v1054 = vshrl.u32 %v1030, 16
        %v1055 = vand.u32 %v1025, 65535
        %v1056 = vshrl.u32 %v1025, 16
        %v1057 = vmul.u32 %v1053, %v1055
        %v1058 = vmul.u32 %v1053, %v1056
        %v1059 = vmul.u32 %v1054, %v1055
        %v1060 = vmul.u32 %v1054, %v1056
        %v1061 = vshll.u32 %v1058, 16
        %v1062 = vshrl.u32 %v1058, 16
        %v1063 = vshll.u32 %v1059, 16
        %v1064 = vshrl.u32 %v1059, 16
        %vm1065 = vc.u32 %v1057, %v1061
        %v1066 = vsel %vm1065, 1, 0
        %v1067 = vadd.s32 %v1057, %v1061
        %v1068 = vadd.s32 %v1060, %v1066
        %vm1069 = vc.u32 %v1067, %v1063
        %v1070 = vsel %vm1069, 1, 0
        %v1071 = vadd.s32 %v1067, %v1063
        %v1072 = vadd.s32 %v1068, %v1070
        %v1073 = vadd.s32 %v1072, %v1062
        %v1074 = vadd.s32 %v1073, %v1064
        %v1075 = vmul.u32 %v1030, %v1021
        %v1076 = vadd.s32 %v1052, %v1071
        %vm1077 = vc.u32 %v1052, %v1071
        %v1078 = vadd.s32 %v1074, 1
        %v1079 = vsel %vm1077, %v1078, %v1074
        %v1080 = vadd.s32 %v1075, %v1079
        %v1081 = vadd.s32 %v1080, 536870912
        %v1082 = vshrl.u32 %v1081, 30
        %v1083 = vshll.u32 %v1082, 30
        %v1084 = vsub.s32 %v1080, %v1083
        %vm1085 = vcmp.lt.s32.totalorder %v1084, 0
        %v1086 = vsub.s32 0, %v1084
        %v1087 = vsel %vm1085, %v1086, %v1084
        %v1088 = vclz %v1087
        %v1089 = vsub.s32 %v1088, 2
        %vm1090 = vcmp.gt.s32.totalorder 0, %v1089
        %v1091 = vsel %vm1090, 0, %v1089
        %v1092 = vsub.s32 32, %v1091
        %v1093 = vshll.u32 %v1084, %v1091
        %v1094 = vshrl.u32 %v1076, %v1092
        %v1095 = vor.u32 %v1093, %v1094
        %v1096 = vsub.s32 4294967266, %v1091
        %v1097 = vadd.s32 %v1096, 127
        %v1098 = vshll.u32 %v1097, 23
        %v1099 = vor.u32 4788187, %v1098
        %v1100 = vand.u32 2147483647, %v1099
        %v1102 = vcvt.s32.f32 %v1095
        %v1103 = vmul.f32 %v1102, %v1100
        %v1104 = vxor.u32 %v1103, 2147483648
        %v1105 = vsel %vm984, %v1104, %v1103
        %v1106 = vsub.s32 4, %v1082
        %v1107 = vsel %vm984, %v1106, %v1082
        %v1108 = vsel %vm983, %v353, %v1105
        %v1109 = vsel %vm983, 0, %v1107
        %v1110 = vmul.f32 %v1108, %v1108
        %v1111 = vmul.f32 %v1110, -0.001358992
        %v1112 = vadd.f32 %v1111, 0.041655596
        %v1113 = vmul.f32 %v1110, %v1112
        %v1114 = vadd.f32 %v1113, -0.4999988
        %v1115 = vmul.f32 %v1110, %v1114
        %v1116 = vadd.f32 1.0, %v1115
        %v1117 = vmul.f32 %v1108, %v1108
        %v1118 = vmul.f32 %v1117, -0.00019511016
        %v1119 = vadd.f32 %v1118, 0.008332121
        %v1120 = vmul.f32 %v1117, %v1119
        %v1121 = vadd.f32 %v1120, -0.16666654
        %v1122 = vmul.f32 %v1117, %v1121
        %v1123 = vadd.f32 %v1122, 1.0
        %v1124 = vmul.f32 %v1123, %v1108
        %vm1125 = vweird.f32 %v353
        %v1126 = vadd.s32 %v1109, 3
        %v1127 = vand.u32 %v1126, 3
        %vm1128 = vcmp.lt.s32.totalorder %v1127, 2
        %vm1129 = vcmp.eq.s32.totalorder %v1127, 0
        %v1130 = vxor.u32 %v1124, 2147483648
        %v1131 = vsel %vm1129, %v1116, %v1130
        %vm1132 = vcmp.eq.s32.totalorder %v1127, 2
        %v1133 = vxor.u32 %v1116, 2147483648
        %v1134 = vsel %vm1132, %v1133, %v1124
        %v1135 = vsel %vm1128, %v1131, %v1134
        %v1136 = vsel %vm1125, nan, %v1135
        %v1137 = vand.u32 2147483647, %v354
        %vm1138 = vcmp.le.f32.partialorder %v1137, 0.7853982
        %vm1139 = vcmp.lt.s32.totalorder %v354, 0
        %v1140 = vand.u32 %v354, 2139095040
        %v1141 = vshrl.u32 %v1140, 23
        %v1142 = vsub.s32 %v1141, 127
        %v1143 = vand.u32 2147483647, %v354
        %v1144 = vand.u32 %v1143, 8388607
        %v1145 = vor.u32 %v1144, 8388608
        %v1146 = vsub.s32 0, %v1145
        %v1147 = vadd.s32 %v1142, 1
        %vm1148 = vcmp.gt.s32.totalorder %v1147, 0
        %v1149 = vsel %vm1148, %v1147, 0
        %v1150 = vshrl.u32 %v1149, 5
        %v1151 = vand.u32 %v1149, 31
        %v1152 = vsub.s32 32, %v1151
        %v1153 = vshrl.u32 683565275, %v1152
        %v1154 = vshll.u32 683565275, %v1151
        %v1155 = vshrl.u32 2475754826, %v1152
        %v1156 = vor.u32 %v1154, %v1155
        %v1157 = vshll.u32 2475754826, %v1151
        %v1158 = vshrl.u32 2131351028, %v1152
        %v1159 = vor.u32 %v1157, %v1158
        %v1160 = vshll.u32 2131351028, %v1151
        %v1161 = vshrl.u32 2102212464, %v1152
        %v1162 = vor.u32 %v1160, %v1161
        %v1163 = vshll.u32 2102212464, %v1151
        %v1164 = vshrl.u32 920167782, %v1152
        %v1165 = vor.u32 %v1163, %v1164
        %v1166 = vshll.u32 920167782, %v1151
        %v1167 = vshrl.u32 1326507024, %v1152
        %v1168 = vor.u32 %v1166, %v1167
        %vm1169 = vcmp.lt.s32.totalorder %v1150, 1
        %vm1170 = vcmp.lt.s32.totalorder %v1150, 2
        %vm1171 = vcmp.lt.s32.totalorder %v1150, 3
        %vm1172 = vcmp.lt.s32.totalorder %v1150, 4
        %v1173 = vsel %vm1169, %v1153, %v1156
        %v1174 = vsel %vm1172, %v1162, 2102212464
        %v1175 = vsel %vm1171, %v1159, %v1174
        %v1176 = vsel %vm1170, %v1173, %v1175
        %v1177 = vsel %vm1169, %v1156, %v1159
        %v1178 = vsel %vm1172, %v1165, 920167782
        %v1179 = vsel %vm1171, %v1162, %v1178
        %v1180 = vsel %vm1170, %v1177, %v1179
        %v1181 = vsel %vm1169, %v1159, %v1162
        %v1182 = vsel %vm1172, %v1168, 1326507024
        %v1183 = vsel %vm1171, %v1165, %v1182
        %v1184 = vsel %vm1170, %v1181, %v1183
        %v1185 = vshll.u32 %v1145, 8
        %v1186 = vand.u32 %v1185, 65535
        %v1187 = vshrl.u32 %v1185, 16
        %v1188 = vand.u32 %v1184, 65535
        %v1189 = vshrl.u32 %v1184, 16
        %v1190 = vmul.u32 %v1186, %v1188
        %v1191 = vmul.u32 %v1186, %v1189
        %v1192 = vmul.u32 %v1187, %v1188
        %v1193 = vmul.u32 %v1187, %v1189
        %v1194 = vshll.u32 %v1191, 16
        %v1195 = vshrl.u32 %v1191, 16
        %v1196 = vshll.u32 %v1192, 16
        %v1197 = vshrl.u32 %v1192, 16
        %vm1198 = vc.u32 %v1190, %v1194
        %v1199 = vsel %vm1198, 1, 0
        %v1200 = vadd.s32 %v1190, %v1194
        %v1201 = vadd.s32 %v1193, %v1199
        %vm1202 = vc.u32 %v1200, %v1196
        %v1203 = vsel %vm1202, 1, 0
        %v1204 = vadd.s32 %v1200, %v1196
        %v1205 = vadd.s32 %v1201, %v1203
        %v1206 = vadd.s32 %v1205, %v1195
        %v1207 = vadd.s32 %v1206, %v1197
        %v1208 = vand.u32 %v1185, 65535
        %v1209 = vshrl.u32 %v1185, 16
        %v1210 = vand.u32 %v1180, 65535
        %v1211 = vshrl.u32 %v1180, 16
        %v1212 = vmul.u32 %v1208, %v1210
        %v1213 = vmul.u32 %v1208, %v1211
        %v1214 = vmul.u32 %v1209, %v1210
        %v1215 = vmul.u32 %v1209, %v1211
        %v1216 = vshll.u32 %v1213, 16
        %v1217 = vshrl.u32 %v1213, 16
        %v1218 = vshll.u32 %v1214, 16
        %v1219 = vshrl.u32 %v1214, 16
        %vm1220 = vc.u32 %v1212, %v1216
        %v1221 = vsel %vm1220, 1, 0
        %v1222 = vadd.s32 %v1212, %v1216
        %v1223 = vadd.s32 %v1215, %v1221
        %vm1224 = vc.u32 %v1222, %v1218
        %v1225 = vsel %vm1224, 1, 0
        %v1226 = vadd.s32 %v1222, %v1218
        %v1227 = vadd.s32 %v1223, %v1225
        %v1228 = vadd.s32 %v1227, %v1217
        %v1229 = vadd.s32 %v1228, %v1219
        %v1230 = vmul.u32 %v1185, %v1176
        %v1231 = vadd.s32 %v1207, %v1226
        %vm1232 = vc.u32 %v1207, %v1226
        %v1233 = vadd.s32 %v1229, 1
        %v1234 = vsel %vm1232, %v1233, %v1229
        %v1235 = vadd.s32 %v1230, %v1234
        %v1236 = vadd.s32 %v1235, 536870912
        %v1237 = vshrl.u32 %v1236, 30
        %v1238 = vshll.u32 %v1237, 30
        %v1239 = vsub.s32 %v1235, %v1238
        %vm1240 = vcmp.lt.s32.totalorder %v1239, 0
        %v1241 = vsub.s32 0, %v1239
        %v1242 = vsel %vm1240, %v1241, %v1239
        %v1243 = vclz %v1242
        %v1244 = vsub.s32 %v1243, 2
        %vm1245 = vcmp.gt.s32.totalorder 0, %v1244
        %v1246 = vsel %vm1245, 0, %v1244
        %v1247 = vsub.s32 32, %v1246
        %v1248 = vshll.u32 %v1239, %v1246
        %v1249 = vshrl.u32 %v1231, %v1247
        %v1250 = vor.u32 %v1248, %v1249
        %v1251 = vsub.s32 4294967266, %v1246
        %v1252 = vadd.s32 %v1251, 127
        %v1253 = vshll.u32 %v1252, 23
        %v1254 = vor.u32 4788187, %v1253
        %v1255 = vand.u32 2147483647, %v1254
        %v1257 = vcvt.s32.f32 %v1250
        %v1258 = vmul.f32 %v1257, %v1255
        %v1259 = vxor.u32 %v1258, 2147483648
        %v1260 = vsel %vm1139, %v1259, %v1258
        %v1261 = vsub.s32 4, %v1237
        %v1262 = vsel %vm1139, %v1261, %v1237
        %v1263 = vsel %vm1138, %v354, %v1260
        %v1264 = vsel %vm1138, 0, %v1262
        %v1265 = vmul.f32 %v1263, %v1263
        %v1266 = vmul.f32 %v1265, -0.001358992
        %v1267 = vadd.f32 %v1266, 0.041655596
        %v1268 = vmul.f32 %v1265, %v1267
        %v1269 = vadd.f32 %v1268, -0.4999988
        %v1270 = vmul.f32 %v1265, %v1269
        %v1271 = vadd.f32 1.0, %v1270
        %v1272 = vmul.f32 %v1263, %v1263
        %v1273 = vmul.f32 %v1272, -0.00019511016
        %v1274 = vadd.f32 %v1273, 0.008332121
        %v1275 = vmul.f32 %v1272, %v1274
        %v1276 = vadd.f32 %v1275, -0.16666654
        %v1277 = vmul.f32 %v1272, %v1276
        %v1278 = vadd.f32 %v1277, 1.0
        %v1279 = vmul.f32 %v1278, %v1263
        %vm1280 = vweird.f32 %v354
        %v1281 = vadd.s32 %v1264, 3
        %v1282 = vand.u32 %v1281, 3
        %vm1283 = vcmp.lt.s32.totalorder %v1282, 2
        %vm1284 = vcmp.eq.s32.totalorder %v1282, 0
        %v1285 = vxor.u32 %v1279, 2147483648
        %v1286 = vsel %vm1284, %v1271, %v1285
        %vm1287 = vcmp.eq.s32.totalorder %v1282, 2
        %v1288 = vxor.u32 %v1271, 2147483648
        %v1289 = vsel %vm1287, %v1288, %v1279
        %v1290 = vsel %vm1283, %v1286, %v1289
        %v1291 = vsel %vm1280, nan, %v1290
        %v1292 = vand.u32 2147483647, %v355
        %vm1293 = vcmp.le.f32.partialorder %v1292, 0.7853982
        %vm1294 = vcmp.lt.s32.totalorder %v355, 0
        %v1295 = vand.u32 %v355, 2139095040
        %v1296 = vshrl.u32 %v1295, 23
        %v1297 = vsub.s32 %v1296, 127
        %v1298 = vand.u32 2147483647, %v355
        %v1299 = vand.u32 %v1298, 8388607
        %v1300 = vor.u32 %v1299, 8388608
        %v1301 = vsub.s32 0, %v1300
        %v1302 = vadd.s32 %v1297, 1
        %vm1303 = vcmp.gt.s32.totalorder %v1302, 0
        %v1304 = vsel %vm1303, %v1302, 0
        %v1305 = vshrl.u32 %v1304, 5
        %v1306 = vand.u32 %v1304, 31
        %v1307 = vsub.s32 32, %v1306
        %v1308 = vshrl.u32 683565275, %v1307
        %v1309 = vshll.u32 683565275, %v1306
        %v1310 = vshrl.u32 2475754826, %v1307
        %v1311 = vor.u32 %v1309, %v1310
        %v1312 = vshll.u32 2475754826, %v1306
        %v1313 = vshrl.u32 2131351028, %v1307
        %v1314 = vor.u32 %v1312, %v1313
        %v1315 = vshll.u32 2131351028, %v1306
        %v1316 = vshrl.u32 2102212464, %v1307
        %v1317 = vor.u32 %v1315, %v1316
        %v1318 = vshll.u32 2102212464, %v1306
        %v1319 = vshrl.u32 920167782, %v1307
        %v1320 = vor.u32 %v1318, %v1319
        %v1321 = vshll.u32 920167782, %v1306
        %v1322 = vshrl.u32 1326507024, %v1307
        %v1323 = vor.u32 %v1321, %v1322
        %vm1324 = vcmp.lt.s32.totalorder %v1305, 1
        %vm1325 = vcmp.lt.s32.totalorder %v1305, 2
        %vm1326 = vcmp.lt.s32.totalorder %v1305, 3
        %vm1327 = vcmp.lt.s32.totalorder %v1305, 4
        %v1328 = vsel %vm1324, %v1308, %v1311
        %v1329 = vsel %vm1327, %v1317, 2102212464
        %v1330 = vsel %vm1326, %v1314, %v1329
        %v1331 = vsel %vm1325, %v1328, %v1330
        %v1332 = vsel %vm1324, %v1311, %v1314
        %v1333 = vsel %vm1327, %v1320, 920167782
        %v1334 = vsel %vm1326, %v1317, %v1333
        %v1335 = vsel %vm1325, %v1332, %v1334
        %v1336 = vsel %vm1324, %v1314, %v1317
        %v1337 = vsel %vm1327, %v1323, 1326507024
        %v1338 = vsel %vm1326, %v1320, %v1337
        %v1339 = vsel %vm1325, %v1336, %v1338
        %v1340 = vshll.u32 %v1300, 8
        %v1341 = vand.u32 %v1340, 65535
        %v1342 = vshrl.u32 %v1340, 16
        %v1343 = vand.u32 %v1339, 65535
        %v1344 = vshrl.u32 %v1339, 16
        %v1345 = vmul.u32 %v1341, %v1343
        %v1346 = vmul.u32 %v1341, %v1344
        %v1347 = vmul.u32 %v1342, %v1343
        %v1348 = vmul.u32 %v1342, %v1344
        %v1349 = vshll.u32 %v1346, 16
        %v1350 = vshrl.u32 %v1346, 16
        %v1351 = vshll.u32 %v1347, 16
        %v1352 = vshrl.u32 %v1347, 16
        %vm1353 = vc.u32 %v1345, %v1349
        %v1354 = vsel %vm1353, 1, 0
        %v1355 = vadd.s32 %v1345, %v1349
        %v1356 = vadd.s32 %v1348, %v1354
        %vm1357 = vc.u32 %v1355, %v1351
        %v1358 = vsel %vm1357, 1, 0
        %v1359 = vadd.s32 %v1355, %v1351
        %v1360 = vadd.s32 %v1356, %v1358
        %v1361 = vadd.s32 %v1360, %v1350
        %v1362 = vadd.s32 %v1361, %v1352
        %v1363 = vand.u32 %v1340, 65535
        %v1364 = vshrl.u32 %v1340, 16
        %v1365 = vand.u32 %v1335, 65535
        %v1366 = vshrl.u32 %v1335, 16
        %v1367 = vmul.u32 %v1363, %v1365
        %v1368 = vmul.u32 %v1363, %v1366
        %v1369 = vmul.u32 %v1364, %v1365
        %v1370 = vmul.u32 %v1364, %v1366
        %v1371 = vshll.u32 %v1368, 16
        %v1372 = vshrl.u32 %v1368, 16
        %v1373 = vshll.u32 %v1369, 16
        %v1374 = vshrl.u32 %v1369, 16
        %vm1375 = vc.u32 %v1367, %v1371
        %v1376 = vsel %vm1375, 1, 0
        %v1377 = vadd.s32 %v1367, %v1371
        %v1378 = vadd.s32 %v1370, %v1376
        %vm1379 = vc.u32 %v1377, %v1373
        %v1380 = vsel %vm1379, 1, 0
        %v1381 = vadd.s32 %v1377, %v1373
        %v1382 = vadd.s32 %v1378, %v1380
        %v1383 = vadd.s32 %v1382, %v1372
        %v1384 = vadd.s32 %v1383, %v1374
        %v1385 = vmul.u32 %v1340, %v1331
        %v1386 = vadd.s32 %v1362, %v1381
        %vm1387 = vc.u32 %v1362, %v1381
        %v1388 = vadd.s32 %v1384, 1
        %v1389 = vsel %vm1387, %v1388, %v1384
        %v1390 = vadd.s32 %v1385, %v1389
        %v1391 = vadd.s32 %v1390, 536870912
        %v1392 = vshrl.u32 %v1391, 30
        %v1393 = vshll.u32 %v1392, 30
        %v1394 = vsub.s32 %v1390, %v1393
        %vm1395 = vcmp.lt.s32.totalorder %v1394, 0
        %v1396 = vsub.s32 0, %v1394
        %v1397 = vsel %vm1395, %v1396, %v1394
        %v1398 = vclz %v1397
        %v1399 = vsub.s32 %v1398, 2
        %vm1400 = vcmp.gt.s32.totalorder 0, %v1399
        %v1401 = vsel %vm1400, 0, %v1399
        %v1402 = vsub.s32 32, %v1401
        %v1403 = vshll.u32 %v1394, %v1401
        %v1404 = vshrl.u32 %v1386, %v1402
        %v1405 = vor.u32 %v1403, %v1404
        %v1406 = vsub.s32 4294967266, %v1401
        %v1407 = vadd.s32 %v1406, 127
        %v1408 = vshll.u32 %v1407, 23
        %v1409 = vor.u32 4788187, %v1408
        %v1410 = vand.u32 2147483647, %v1409
        %v1412 = vcvt.s32.f32 %v1405
        %v1413 = vmul.f32 %v1412, %v1410
        %v1414 = vxor.u32 %v1413, 2147483648
        %v1415 = vsel %vm1294, %v1414, %v1413
        %v1416 = vsub.s32 4, %v1392
        %v1417 = vsel %vm1294, %v1416, %v1392
        %v1418 = vsel %vm1293, %v355, %v1415
        %v1419 = vsel %vm1293, 0, %v1417
        %v1420 = vmul.f32 %v1418, %v1418
        %v1421 = vmul.f32 %v1420, -0.001358992
        %v1422 = vadd.f32 %v1421, 0.041655596
        %v1423 = vmul.f32 %v1420, %v1422
        %v1424 = vadd.f32 %v1423, -0.4999988
        %v1425 = vmul.f32 %v1420, %v1424
        %v1426 = vadd.f32 1.0, %v1425
        %v1427 = vmul.f32 %v1418, %v1418
        %v1428 = vmul.f32 %v1427, -0.00019511016
        %v1429 = vadd.f32 %v1428, 0.008332121
        %v1430 = vmul.f32 %v1427, %v1429
        %v1431 = vadd.f32 %v1430, -0.16666654
        %v1432 = vmul.f32 %v1427, %v1431
        %v1433 = vadd.f32 %v1432, 1.0
        %v1434 = vmul.f32 %v1433, %v1418
        %vm1435 = vweird.f32 %v355
        %v1436 = vadd.s32 %v1419, 3
        %v1437 = vand.u32 %v1436, 3
        %vm1438 = vcmp.lt.s32.totalorder %v1437, 2
        %vm1439 = vcmp.eq.s32.totalorder %v1437, 0
        %v1440 = vxor.u32 %v1434, 2147483648
        %v1441 = vsel %vm1439, %v1426, %v1440
        %vm1442 = vcmp.eq.s32.totalorder %v1437, 2
        %v1443 = vxor.u32 %v1426, 2147483648
        %v1444 = vsel %vm1442, %v1443, %v1434
        %v1445 = vsel %vm1438, %v1441, %v1444
        %v1446 = vsel %vm1435, nan, %v1445
        %v1447 = vand.u32 2147483647, %v356
        %vm1448 = vcmp.le.f32.partialorder %v1447, 0.7853982
        %vm1449 = vcmp.lt.s32.totalorder %v356, 0
        %v1450 = vand.u32 %v356, 2139095040
        %v1451 = vshrl.u32 %v1450, 23
        %v1452 = vsub.s32 %v1451, 127
        %v1453 = vand.u32 2147483647, %v356
        %v1454 = vand.u32 %v1453, 8388607
        %v1455 = vor.u32 %v1454, 8388608
        %v1456 = vsub.s32 0, %v1455
        %v1457 = vadd.s32 %v1452, 1
        %vm1458 = vcmp.gt.s32.totalorder %v1457, 0
        %v1459 = vsel %vm1458, %v1457, 0
        %v1460 = vshrl.u32 %v1459, 5
        %v1461 = vand.u32 %v1459, 31
        %v1462 = vsub.s32 32, %v1461
        %v1463 = vshrl.u32 683565275, %v1462
        %v1464 = vshll.u32 683565275, %v1461
        %v1465 = vshrl.u32 2475754826, %v1462
        %v1466 = vor.u32 %v1464, %v1465
        %v1467 = vshll.u32 2475754826, %v1461
        %v1468 = vshrl.u32 2131351028, %v1462
        %v1469 = vor.u32 %v1467, %v1468
        %v1470 = vshll.u32 2131351028, %v1461
        %v1471 = vshrl.u32 2102212464, %v1462
        %v1472 = vor.u32 %v1470, %v1471
        %v1473 = vshll.u32 2102212464, %v1461
        %v1474 = vshrl.u32 920167782, %v1462
        %v1475 = vor.u32 %v1473, %v1474
        %v1476 = vshll.u32 920167782, %v1461
        %v1477 = vshrl.u32 1326507024, %v1462
        %v1478 = vor.u32 %v1476, %v1477
        %vm1479 = vcmp.lt.s32.totalorder %v1460, 1
        %vm1480 = vcmp.lt.s32.totalorder %v1460, 2
        %vm1481 = vcmp.lt.s32.totalorder %v1460, 3
        %vm1482 = vcmp.lt.s32.totalorder %v1460, 4
        %v1483 = vsel %vm1479, %v1463, %v1466
        %v1484 = vsel %vm1482, %v1472, 2102212464
        %v1485 = vsel %vm1481, %v1469, %v1484
        %v1486 = vsel %vm1480, %v1483, %v1485
        %v1487 = vsel %vm1479, %v1466, %v1469
        %v1488 = vsel %vm1482, %v1475, 920167782
        %v1489 = vsel %vm1481, %v1472, %v1488
        %v1490 = vsel %vm1480, %v1487, %v1489
        %v1491 = vsel %vm1479, %v1469, %v1472
        %v1492 = vsel %vm1482, %v1478, 1326507024
        %v1493 = vsel %vm1481, %v1475, %v1492
        %v1494 = vsel %vm1480, %v1491, %v1493
        %v1495 = vshll.u32 %v1455, 8
        %v1496 = vand.u32 %v1495, 65535
        %v1497 = vshrl.u32 %v1495, 16
        %v1498 = vand.u32 %v1494, 65535
        %v1499 = vshrl.u32 %v1494, 16
        %v1500 = vmul.u32 %v1496, %v1498
        %v1501 = vmul.u32 %v1496, %v1499
        %v1502 = vmul.u32 %v1497, %v1498
        %v1503 = vmul.u32 %v1497, %v1499
        %v1504 = vshll.u32 %v1501, 16
        %v1505 = vshrl.u32 %v1501, 16
        %v1506 = vshll.u32 %v1502, 16
        %v1507 = vshrl.u32 %v1502, 16
        %vm1508 = vc.u32 %v1500, %v1504
        %v1509 = vsel %vm1508, 1, 0
        %v1510 = vadd.s32 %v1500, %v1504
        %v1511 = vadd.s32 %v1503, %v1509
        %vm1512 = vc.u32 %v1510, %v1506
        %v1513 = vsel %vm1512, 1, 0
        %v1514 = vadd.s32 %v1510, %v1506
        %v1515 = vadd.s32 %v1511, %v1513
        %v1516 = vadd.s32 %v1515, %v1505
        %v1517 = vadd.s32 %v1516, %v1507
        %v1518 = vand.u32 %v1495, 65535
        %v1519 = vshrl.u32 %v1495, 16
        %v1520 = vand.u32 %v1490, 65535
        %v1521 = vshrl.u32 %v1490, 16
        %v1522 = vmul.u32 %v1518, %v1520
        %v1523 = vmul.u32 %v1518, %v1521
        %v1524 = vmul.u32 %v1519, %v1520
        %v1525 = vmul.u32 %v1519, %v1521
        %v1526 = vshll.u32 %v1523, 16
        %v1527 = vshrl.u32 %v1523, 16
        %v1528 = vshll.u32 %v1524, 16
        %v1529 = vshrl.u32 %v1524, 16
        %vm1530 = vc.u32 %v1522, %v1526
        %v1531 = vsel %vm1530, 1, 0
        %v1532 = vadd.s32 %v1522, %v1526
        %v1533 = vadd.s32 %v1525, %v1531
        %vm1534 = vc.u32 %v1532, %v1528
        %v1535 = vsel %vm1534, 1, 0
        %v1536 = vadd.s32 %v1532, %v1528
        %v1537 = vadd.s32 %v1533, %v1535
        %v1538 = vadd.s32 %v1537, %v1527
        %v1539 = vadd.s32 %v1538, %v1529
        %v1540 = vmul.u32 %v1495, %v1486
        %v1541 = vadd.s32 %v1517, %v1536
        %vm1542 = vc.u32 %v1517, %v1536
        %v1543 = vadd.s32 %v1539, 1
        %v1544 = vsel %vm1542, %v1543, %v1539
        %v1545 = vadd.s32 %v1540, %v1544
        %v1546 = vadd.s32 %v1545, 536870912
        %v1547 = vshrl.u32 %v1546, 30
        %v1548 = vshll.u32 %v1547, 30
        %v1549 = vsub.s32 %v1545, %v1548
        %vm1550 = vcmp.lt.s32.totalorder %v1549, 0
        %v1551 = vsub.s32 0, %v1549
        %v1552 = vsel %vm1550, %v1551, %v1549
        %v1553 = vclz %v1552
        %v1554 = vsub.s32 %v1553, 2
        %vm1555 = vcmp.gt.s32.totalorder 0, %v1554
        %v1556 = vsel %vm1555, 0, %v1554
        %v1557 = vsub.s32 32, %v1556
        %v1558 = vshll.u32 %v1549, %v1556
        %v1559 = vshrl.u32 %v1541, %v1557
        %v1560 = vor.u32 %v1558, %v1559
        %v1561 = vsub.s32 4294967266, %v1556
        %v1562 = vadd.s32 %v1561, 127
        %v1563 = vshll.u32 %v1562, 23
        %v1564 = vor.u32 4788187, %v1563
        %v1565 = vand.u32 2147483647, %v1564
        %v1567 = vcvt.s32.f32 %v1560
        %v1568 = vmul.f32 %v1567, %v1565
        %v1569 = vxor.u32 %v1568, 2147483648
        %v1570 = vsel %vm1449, %v1569, %v1568
        %v1571 = vsub.s32 4, %v1547
        %v1572 = vsel %vm1449, %v1571, %v1547
        %v1573 = vsel %vm1448, %v356, %v1570
        %v1574 = vsel %vm1448, 0, %v1572
        %v1575 = vmul.f32 %v1573, %v1573
        %v1576 = vmul.f32 %v1575, -0.001358992
        %v1577 = vadd.f32 %v1576, 0.041655596
        %v1578 = vmul.f32 %v1575, %v1577
        %v1579 = vadd.f32 %v1578, -0.4999988
        %v1580 = vmul.f32 %v1575, %v1579
        %v1581 = vadd.f32 1.0, %v1580
        %v1582 = vmul.f32 %v1573, %v1573
        %v1583 = vmul.f32 %v1582, -0.00019511016
        %v1584 = vadd.f32 %v1583, 0.008332121
        %v1585 = vmul.f32 %v1582, %v1584
        %v1586 = vadd.f32 %v1585, -0.16666654
        %v1587 = vmul.f32 %v1582, %v1586
        %v1588 = vadd.f32 %v1587, 1.0
        %v1589 = vmul.f32 %v1588, %v1573
        %vm1590 = vweird.f32 %v356
        %v1591 = vadd.s32 %v1574, 3
        %v1592 = vand.u32 %v1591, 3
        %vm1593 = vcmp.lt.s32.totalorder %v1592, 2
        %vm1594 = vcmp.eq.s32.totalorder %v1592, 0
        %v1595 = vxor.u32 %v1589, 2147483648
        %v1596 = vsel %vm1594, %v1581, %v1595
        %vm1597 = vcmp.eq.s32.totalorder %v1592, 2
        %v1598 = vxor.u32 %v1581, 2147483648
        %v1599 = vsel %vm1597, %v1598, %v1589
        %v1600 = vsel %vm1593, %v1596, %v1599
        %v1601 = vsel %vm1590, nan, %v1600
        %v1602 = vand.u32 2147483647, %v357
        %vm1603 = vcmp.le.f32.partialorder %v1602, 0.7853982
        %vm1604 = vcmp.lt.s32.totalorder %v357, 0
        %v1605 = vand.u32 %v357, 2139095040
        %v1606 = vshrl.u32 %v1605, 23
        %v1607 = vsub.s32 %v1606, 127
        %v1608 = vand.u32 2147483647, %v357
        %v1609 = vand.u32 %v1608, 8388607
        %v1610 = vor.u32 %v1609, 8388608
        %v1611 = vsub.s32 0, %v1610
        %v1612 = vadd.s32 %v1607, 1
        %vm1613 = vcmp.gt.s32.totalorder %v1612, 0
        %v1614 = vsel %vm1613, %v1612, 0
        %v1615 = vshrl.u32 %v1614, 5
        %v1616 = vand.u32 %v1614, 31
        %v1617 = vsub.s32 32, %v1616
        %v1618 = vshrl.u32 683565275, %v1617
        %v1619 = vshll.u32 683565275, %v1616
        %v1620 = vshrl.u32 2475754826, %v1617
        %v1621 = vor.u32 %v1619, %v1620
        %v1622 = vshll.u32 2475754826, %v1616
        %v1623 = vshrl.u32 2131351028, %v1617
        %v1624 = vor.u32 %v1622, %v1623
        %v1625 = vshll.u32 2131351028, %v1616
        %v1626 = vshrl.u32 2102212464, %v1617
        %v1627 = vor.u32 %v1625, %v1626
        %v1628 = vshll.u32 2102212464, %v1616
        %v1629 = vshrl.u32 920167782, %v1617
        %v1630 = vor.u32 %v1628, %v1629
        %v1631 = vshll.u32 920167782, %v1616
        %v1632 = vshrl.u32 1326507024, %v1617
        %v1633 = vor.u32 %v1631, %v1632
        %vm1634 = vcmp.lt.s32.totalorder %v1615, 1
        %vm1635 = vcmp.lt.s32.totalorder %v1615, 2
        %vm1636 = vcmp.lt.s32.totalorder %v1615, 3
        %vm1637 = vcmp.lt.s32.totalorder %v1615, 4
        %v1638 = vsel %vm1634, %v1618, %v1621
        %v1639 = vsel %vm1637, %v1627, 2102212464
        %v1640 = vsel %vm1636, %v1624, %v1639
        %v1641 = vsel %vm1635, %v1638, %v1640
        %v1642 = vsel %vm1634, %v1621, %v1624
        %v1643 = vsel %vm1637, %v1630, 920167782
        %v1644 = vsel %vm1636, %v1627, %v1643
        %v1645 = vsel %vm1635, %v1642, %v1644
        %v1646 = vsel %vm1634, %v1624, %v1627
        %v1647 = vsel %vm1637, %v1633, 1326507024
        %v1648 = vsel %vm1636, %v1630, %v1647
        %v1649 = vsel %vm1635, %v1646, %v1648
        %v1650 = vshll.u32 %v1610, 8
        %v1651 = vand.u32 %v1650, 65535
        %v1652 = vshrl.u32 %v1650, 16
        %v1653 = vand.u32 %v1649, 65535
        %v1654 = vshrl.u32 %v1649, 16
        %v1655 = vmul.u32 %v1651, %v1653
        %v1656 = vmul.u32 %v1651, %v1654
        %v1657 = vmul.u32 %v1652, %v1653
        %v1658 = vmul.u32 %v1652, %v1654
        %v1659 = vshll.u32 %v1656, 16
        %v1660 = vshrl.u32 %v1656, 16
        %v1661 = vshll.u32 %v1657, 16
        %v1662 = vshrl.u32 %v1657, 16
        %vm1663 = vc.u32 %v1655, %v1659
        %v1664 = vsel %vm1663, 1, 0
        %v1665 = vadd.s32 %v1655, %v1659
        %v1666 = vadd.s32 %v1658, %v1664
        %vm1667 = vc.u32 %v1665, %v1661
        %v1668 = vsel %vm1667, 1, 0
        %v1669 = vadd.s32 %v1665, %v1661
        %v1670 = vadd.s32 %v1666, %v1668
        %v1671 = vadd.s32 %v1670, %v1660
        %v1672 = vadd.s32 %v1671, %v1662
        %v1673 = vand.u32 %v1650, 65535
        %v1674 = vshrl.u32 %v1650, 16
        %v1675 = vand.u32 %v1645, 65535
        %v1676 = vshrl.u32 %v1645, 16
        %v1677 = vmul.u32 %v1673, %v1675
        %v1678 = vmul.u32 %v1673, %v1676
        %v1679 = vmul.u32 %v1674, %v1675
        %v1680 = vmul.u32 %v1674, %v1676
        %v1681 = vshll.u32 %v1678, 16
        %v1682 = vshrl.u32 %v1678, 16
        %v1683 = vshll.u32 %v1679, 16
        %v1684 = vshrl.u32 %v1679, 16
        %vm1685 = vc.u32 %v1677, %v1681
        %v1686 = vsel %vm1685, 1, 0
        %v1687 = vadd.s32 %v1677, %v1681
        %v1688 = vadd.s32 %v1680, %v1686
        %vm1689 = vc.u32 %v1687, %v1683
        %v1690 = vsel %vm1689, 1, 0
        %v1691 = vadd.s32 %v1687, %v1683
        %v1692 = vadd.s32 %v1688, %v1690
        %v1693 = vadd.s32 %v1692, %v1682
        %v1694 = vadd.s32 %v1693, %v1684
        %v1695 = vmul.u32 %v1650, %v1641
        %v1696 = vadd.s32 %v1672, %v1691
        %vm1697 = vc.u32 %v1672, %v1691
        %v1698 = vadd.s32 %v1694, 1
        %v1699 = vsel %vm1697, %v1698, %v1694
        %v1700 = vadd.s32 %v1695, %v1699
        %v1701 = vadd.s32 %v1700, 536870912
        %v1702 = vshrl.u32 %v1701, 30
        %v1703 = vshll.u32 %v1702, 30
        %v1704 = vsub.s32 %v1700, %v1703
        %vm1705 = vcmp.lt.s32.totalorder %v1704, 0
        %v1706 = vsub.s32 0, %v1704
        %v1707 = vsel %vm1705, %v1706, %v1704
        %v1708 = vclz %v1707
        %v1709 = vsub.s32 %v1708, 2
        %vm1710 = vcmp.gt.s32.totalorder 0, %v1709
        %v1711 = vsel %vm1710, 0, %v1709
        %v1712 = vsub.s32 32, %v1711
        %v1713 = vshll.u32 %v1704, %v1711
        %v1714 = vshrl.u32 %v1696, %v1712
        %v1715 = vor.u32 %v1713, %v1714
        %v1716 = vsub.s32 4294967266, %v1711
        %v1717 = vadd.s32 %v1716, 127
        %v1718 = vshll.u32 %v1717, 23
        %v1719 = vor.u32 4788187, %v1718
        %v1720 = vand.u32 2147483647, %v1719
        %v1722 = vcvt.s32.f32 %v1715
        %v1723 = vmul.f32 %v1722, %v1720
        %v1724 = vxor.u32 %v1723, 2147483648
        %v1725 = vsel %vm1604, %v1724, %v1723
        %v1726 = vsub.s32 4, %v1702
        %v1727 = vsel %vm1604, %v1726, %v1702
        %v1728 = vsel %vm1603, %v357, %v1725
        %v1729 = vsel %vm1603, 0, %v1727
        %v1730 = vmul.f32 %v1728, %v1728
        %v1731 = vmul.f32 %v1730, -0.001358992
        %v1732 = vadd.f32 %v1731, 0.041655596
        %v1733 = vmul.f32 %v1730, %v1732
        %v1734 = vadd.f32 %v1733, -0.4999988
        %v1735 = vmul.f32 %v1730, %v1734
        %v1736 = vadd.f32 1.0, %v1735
        %v1737 = vmul.f32 %v1728, %v1728
        %v1738 = vmul.f32 %v1737, -0.00019511016
        %v1739 = vadd.f32 %v1738, 0.008332121
        %v1740 = vmul.f32 %v1737, %v1739
        %v1741 = vadd.f32 %v1740, -0.16666654
        %v1742 = vmul.f32 %v1737, %v1741
        %v1743 = vadd.f32 %v1742, 1.0
        %v1744 = vmul.f32 %v1743, %v1728
        %vm1745 = vweird.f32 %v357
        %v1746 = vadd.s32 %v1729, 3
        %v1747 = vand.u32 %v1746, 3
        %vm1748 = vcmp.lt.s32.totalorder %v1747, 2
        %vm1749 = vcmp.eq.s32.totalorder %v1747, 0
        %v1750 = vxor.u32 %v1744, 2147483648
        %v1751 = vsel %vm1749, %v1736, %v1750
        %vm1752 = vcmp.eq.s32.totalorder %v1747, 2
        %v1753 = vxor.u32 %v1736, 2147483648
        %v1754 = vsel %vm1752, %v1753, %v1744
        %v1755 = vsel %vm1748, %v1751, %v1754
        %v1756 = vsel %vm1745, nan, %v1755
        %v1757 = vand.u32 2147483647, %v358
        %vm1758 = vcmp.le.f32.partialorder %v1757, 0.7853982
        %vm1759 = vcmp.lt.s32.totalorder %v358, 0
        %v1760 = vand.u32 %v358, 2139095040
        %v1761 = vshrl.u32 %v1760, 23
        %v1762 = vsub.s32 %v1761, 127
        %v1763 = vand.u32 2147483647, %v358
        %v1764 = vand.u32 %v1763, 8388607
        %v1765 = vor.u32 %v1764, 8388608
        %v1766 = vsub.s32 0, %v1765
        %v1767 = vadd.s32 %v1762, 1
        %vm1768 = vcmp.gt.s32.totalorder %v1767, 0
        %v1769 = vsel %vm1768, %v1767, 0
        %v1770 = vshrl.u32 %v1769, 5
        %v1771 = vand.u32 %v1769, 31
        %v1772 = vsub.s32 32, %v1771
        %v1773 = vshrl.u32 683565275, %v1772
        %v1774 = vshll.u32 683565275, %v1771
        %v1775 = vshrl.u32 2475754826, %v1772
        %v1776 = vor.u32 %v1774, %v1775
        %v1777 = vshll.u32 2475754826, %v1771
        %v1778 = vshrl.u32 2131351028, %v1772
        %v1779 = vor.u32 %v1777, %v1778
        %v1780 = vshll.u32 2131351028, %v1771
        %v1781 = vshrl.u32 2102212464, %v1772
        %v1782 = vor.u32 %v1780, %v1781
        %v1783 = vshll.u32 2102212464, %v1771
        %v1784 = vshrl.u32 920167782, %v1772
        %v1785 = vor.u32 %v1783, %v1784
        %v1786 = vshll.u32 920167782, %v1771
        %v1787 = vshrl.u32 1326507024, %v1772
        %v1788 = vor.u32 %v1786, %v1787
        %vm1789 = vcmp.lt.s32.totalorder %v1770, 1
        %vm1790 = vcmp.lt.s32.totalorder %v1770, 2
        %vm1791 = vcmp.lt.s32.totalorder %v1770, 3
        %vm1792 = vcmp.lt.s32.totalorder %v1770, 4
        %v1793 = vsel %vm1789, %v1773, %v1776
        %v1794 = vsel %vm1792, %v1782, 2102212464
        %v1795 = vsel %vm1791, %v1779, %v1794
        %v1796 = vsel %vm1790, %v1793, %v1795
        %v1797 = vsel %vm1789, %v1776, %v1779
        %v1798 = vsel %vm1792, %v1785, 920167782
        %v1799 = vsel %vm1791, %v1782, %v1798
        %v1800 = vsel %vm1790, %v1797, %v1799
        %v1801 = vsel %vm1789, %v1779, %v1782
        %v1802 = vsel %vm1792, %v1788, 1326507024
        %v1803 = vsel %vm1791, %v1785, %v1802
        %v1804 = vsel %vm1790, %v1801, %v1803
        %v1805 = vshll.u32 %v1765, 8
        %v1806 = vand.u32 %v1805, 65535
        %v1807 = vshrl.u32 %v1805, 16
        %v1808 = vand.u32 %v1804, 65535
        %v1809 = vshrl.u32 %v1804, 16
        %v1810 = vmul.u32 %v1806, %v1808
        %v1811 = vmul.u32 %v1806, %v1809
        %v1812 = vmul.u32 %v1807, %v1808
        %v1813 = vmul.u32 %v1807, %v1809
        %v1814 = vshll.u32 %v1811, 16
        %v1815 = vshrl.u32 %v1811, 16
        %v1816 = vshll.u32 %v1812, 16
        %v1817 = vshrl.u32 %v1812, 16
        %vm1818 = vc.u32 %v1810, %v1814
        %v1819 = vsel %vm1818, 1, 0
        %v1820 = vadd.s32 %v1810, %v1814
        %v1821 = vadd.s32 %v1813, %v1819
        %vm1822 = vc.u32 %v1820, %v1816
        %v1823 = vsel %vm1822, 1, 0
        %v1824 = vadd.s32 %v1820, %v1816
        %v1825 = vadd.s32 %v1821, %v1823
        %v1826 = vadd.s32 %v1825, %v1815
        %v1827 = vadd.s32 %v1826, %v1817
        %v1828 = vand.u32 %v1805, 65535
        %v1829 = vshrl.u32 %v1805, 16
        %v1830 = vand.u32 %v1800, 65535
        %v1831 = vshrl.u32 %v1800, 16
        %v1832 = vmul.u32 %v1828, %v1830
        %v1833 = vmul.u32 %v1828, %v1831
        %v1834 = vmul.u32 %v1829, %v1830
        %v1835 = vmul.u32 %v1829, %v1831
        %v1836 = vshll.u32 %v1833, 16
        %v1837 = vshrl.u32 %v1833, 16
        %v1838 = vshll.u32 %v1834, 16
        %v1839 = vshrl.u32 %v1834, 16
        %vm1840 = vc.u32 %v1832, %v1836
        %v1841 = vsel %vm1840, 1, 0
        %v1842 = vadd.s32 %v1832, %v1836
        %v1843 = vadd.s32 %v1835, %v1841
        %vm1844 = vc.u32 %v1842, %v1838
        %v1845 = vsel %vm1844, 1, 0
        %v1846 = vadd.s32 %v1842, %v1838
        %v1847 = vadd.s32 %v1843, %v1845
        %v1848 = vadd.s32 %v1847, %v1837
        %v1849 = vadd.s32 %v1848, %v1839
        %v1850 = vmul.u32 %v1805, %v1796
        %v1851 = vadd.s32 %v1827, %v1846
        %vm1852 = vc.u32 %v1827, %v1846
        %v1853 = vadd.s32 %v1849, 1
        %v1854 = vsel %vm1852, %v1853, %v1849
        %v1855 = vadd.s32 %v1850, %v1854
        %v1856 = vadd.s32 %v1855, 536870912
        %v1857 = vshrl.u32 %v1856, 30
        %v1858 = vshll.u32 %v1857, 30
        %v1859 = vsub.s32 %v1855, %v1858
        %vm1860 = vcmp.lt.s32.totalorder %v1859, 0
        %v1861 = vsub.s32 0, %v1859
        %v1862 = vsel %vm1860, %v1861, %v1859
        %v1863 = vclz %v1862
        %v1864 = vsub.s32 %v1863, 2
        %vm1865 = vcmp.gt.s32.totalorder 0, %v1864
        %v1866 = vsel %vm1865, 0, %v1864
        %v1867 = vsub.s32 32, %v1866
        %v1868 = vshll.u32 %v1859, %v1866
        %v1869 = vshrl.u32 %v1851, %v1867
        %v1870 = vor.u32 %v1868, %v1869
        %v1871 = vsub.s32 4294967266, %v1866
        %v1872 = vadd.s32 %v1871, 127
        %v1873 = vshll.u32 %v1872, 23
        %v1874 = vor.u32 4788187, %v1873
        %v1875 = vand.u32 2147483647, %v1874
        %v1877 = vcvt.s32.f32 %v1870
        %v1878 = vmul.f32 %v1877, %v1875
        %v1879 = vxor.u32 %v1878, 2147483648
        %v1880 = vsel %vm1759, %v1879, %v1878
        %v1881 = vsub.s32 4, %v1857
        %v1882 = vsel %vm1759, %v1881, %v1857
        %v1883 = vsel %vm1758, %v358, %v1880
        %v1884 = vsel %vm1758, 0, %v1882
        %v1885 = vmul.f32 %v1883, %v1883
        %v1886 = vmul.f32 %v1885, -0.001358992
        %v1887 = vadd.f32 %v1886, 0.041655596
        %v1888 = vmul.f32 %v1885, %v1887
        %v1889 = vadd.f32 %v1888, -0.4999988
        %v1890 = vmul.f32 %v1885, %v1889
        %v1891 = vadd.f32 1.0, %v1890
        %v1892 = vmul.f32 %v1883, %v1883
        %v1893 = vmul.f32 %v1892, -0.00019511016
        %v1894 = vadd.f32 %v1893, 0.008332121
        %v1895 = vmul.f32 %v1892, %v1894
        %v1896 = vadd.f32 %v1895, -0.16666654
        %v1897 = vmul.f32 %v1892, %v1896
        %v1898 = vadd.f32 %v1897, 1.0
        %v1899 = vmul.f32 %v1898, %v1883
        %vm1900 = vweird.f32 %v358
        %v1901 = vadd.s32 %v1884, 3
        %v1902 = vand.u32 %v1901, 3
        %vm1903 = vcmp.lt.s32.totalorder %v1902, 2
        %vm1904 = vcmp.eq.s32.totalorder %v1902, 0
        %v1905 = vxor.u32 %v1899, 2147483648
        %v1906 = vsel %vm1904, %v1891, %v1905
        %vm1907 = vcmp.eq.s32.totalorder %v1902, 2
        %v1908 = vxor.u32 %v1891, 2147483648
        %v1909 = vsel %vm1907, %v1908, %v1899
        %v1910 = vsel %vm1903, %v1906, %v1909
        %v1911 = vsel %vm1900, nan, %v1910
        %v1912 = vand.u32 2147483647, %v359
        %vm1913 = vcmp.le.f32.partialorder %v1912, 0.7853982
        %vm1914 = vcmp.lt.s32.totalorder %v359, 0
        %v1915 = vand.u32 %v359, 2139095040
        %v1916 = vshrl.u32 %v1915, 23
        %v1917 = vsub.s32 %v1916, 127
        %v1918 = vand.u32 2147483647, %v359
        %v1919 = vand.u32 %v1918, 8388607
        %v1920 = vor.u32 %v1919, 8388608
        %v1921 = vsub.s32 0, %v1920
        %v1922 = vadd.s32 %v1917, 1
        %vm1923 = vcmp.gt.s32.totalorder %v1922, 0
        %v1924 = vsel %vm1923, %v1922, 0
        %v1925 = vshrl.u32 %v1924, 5
        %v1926 = vand.u32 %v1924, 31
        %v1927 = vsub.s32 32, %v1926
        %v1928 = vshrl.u32 683565275, %v1927
        %v1929 = vshll.u32 683565275, %v1926
        %v1930 = vshrl.u32 2475754826, %v1927
        %v1931 = vor.u32 %v1929, %v1930
        %v1932 = vshll.u32 2475754826, %v1926
        %v1933 = vshrl.u32 2131351028, %v1927
        %v1934 = vor.u32 %v1932, %v1933
        %v1935 = vshll.u32 2131351028, %v1926
        %v1936 = vshrl.u32 2102212464, %v1927
        %v1937 = vor.u32 %v1935, %v1936
        %v1938 = vshll.u32 2102212464, %v1926
        %v1939 = vshrl.u32 920167782, %v1927
        %v1940 = vor.u32 %v1938, %v1939
        %v1941 = vshll.u32 920167782, %v1926
        %v1942 = vshrl.u32 1326507024, %v1927
        %v1943 = vor.u32 %v1941, %v1942
        %vm1944 = vcmp.lt.s32.totalorder %v1925, 1
        %vm1945 = vcmp.lt.s32.totalorder %v1925, 2
        %vm1946 = vcmp.lt.s32.totalorder %v1925, 3
        %vm1947 = vcmp.lt.s32.totalorder %v1925, 4
        %v1948 = vsel %vm1944, %v1928, %v1931
        %v1949 = vsel %vm1947, %v1937, 2102212464
        %v1950 = vsel %vm1946, %v1934, %v1949
        %v1951 = vsel %vm1945, %v1948, %v1950
        %v1952 = vsel %vm1944, %v1931, %v1934
        %v1953 = vsel %vm1947, %v1940, 920167782
        %v1954 = vsel %vm1946, %v1937, %v1953
        %v1955 = vsel %vm1945, %v1952, %v1954
        %v1956 = vsel %vm1944, %v1934, %v1937
        %v1957 = vsel %vm1947, %v1943, 1326507024
        %v1958 = vsel %vm1946, %v1940, %v1957
        %v1959 = vsel %vm1945, %v1956, %v1958
        %v1960 = vshll.u32 %v1920, 8
        %v1961 = vand.u32 %v1960, 65535
        %v1962 = vshrl.u32 %v1960, 16
        %v1963 = vand.u32 %v1959, 65535
        %v1964 = vshrl.u32 %v1959, 16
        %v1965 = vmul.u32 %v1961, %v1963
        %v1966 = vmul.u32 %v1961, %v1964
        %v1967 = vmul.u32 %v1962, %v1963
        %v1968 = vmul.u32 %v1962, %v1964
        %v1969 = vshll.u32 %v1966, 16
        %v1970 = vshrl.u32 %v1966, 16
        %v1971 = vshll.u32 %v1967, 16
        %v1972 = vshrl.u32 %v1967, 16
        %vm1973 = vc.u32 %v1965, %v1969
        %v1974 = vsel %vm1973, 1, 0
        %v1975 = vadd.s32 %v1965, %v1969
        %v1976 = vadd.s32 %v1968, %v1974
        %vm1977 = vc.u32 %v1975, %v1971
        %v1978 = vsel %vm1977, 1, 0
        %v1979 = vadd.s32 %v1975, %v1971
        %v1980 = vadd.s32 %v1976, %v1978
        %v1981 = vadd.s32 %v1980, %v1970
        %v1982 = vadd.s32 %v1981, %v1972
        %v1983 = vand.u32 %v1960, 65535
        %v1984 = vshrl.u32 %v1960, 16
        %v1985 = vand.u32 %v1955, 65535
        %v1986 = vshrl.u32 %v1955, 16
        %v1987 = vmul.u32 %v1983, %v1985
        %v1988 = vmul.u32 %v1983, %v1986
        %v1989 = vmul.u32 %v1984, %v1985
        %v1990 = vmul.u32 %v1984, %v1986
        %v1991 = vshll.u32 %v1988, 16
        %v1992 = vshrl.u32 %v1988, 16
        %v1993 = vshll.u32 %v1989, 16
        %v1994 = vshrl.u32 %v1989, 16
        %vm1995 = vc.u32 %v1987, %v1991
        %v1996 = vsel %vm1995, 1, 0
        %v1997 = vadd.s32 %v1987, %v1991
        %v1998 = vadd.s32 %v1990, %v1996
        %vm1999 = vc.u32 %v1997, %v1993
        %v2000 = vsel %vm1999, 1, 0
        %v2001 = vadd.s32 %v1997, %v1993
        %v2002 = vadd.s32 %v1998, %v2000
        %v2003 = vadd.s32 %v2002, %v1992
        %v2004 = vadd.s32 %v2003, %v1994
        %v2005 = vmul.u32 %v1960, %v1951
        %v2006 = vadd.s32 %v1982, %v2001
        %vm2007 = vc.u32 %v1982, %v2001
        %v2008 = vadd.s32 %v2004, 1
        %v2009 = vsel %vm2007, %v2008, %v2004
        %v2010 = vadd.s32 %v2005, %v2009
        %v2011 = vadd.s32 %v2010, 536870912
        %v2012 = vshrl.u32 %v2011, 30
        %v2013 = vshll.u32 %v2012, 30
        %v2014 = vsub.s32 %v2010, %v2013
        %vm2015 = vcmp.lt.s32.totalorder %v2014, 0
        %v2016 = vsub.s32 0, %v2014
        %v2017 = vsel %vm2015, %v2016, %v2014
        %v2018 = vclz %v2017
        %v2019 = vsub.s32 %v2018, 2
        %vm2020 = vcmp.gt.s32.totalorder 0, %v2019
        %v2021 = vsel %vm2020, 0, %v2019
        %v2022 = vsub.s32 32, %v2021
        %v2023 = vshll.u32 %v2014, %v2021
        %v2024 = vshrl.u32 %v2006, %v2022
        %v2025 = vor.u32 %v2023, %v2024
        %v2026 = vsub.s32 4294967266, %v2021
        %v2027 = vadd.s32 %v2026, 127
        %v2028 = vshll.u32 %v2027, 23
        %v2029 = vor.u32 4788187, %v2028
        %v2030 = vand.u32 2147483647, %v2029
        %v2032 = vcvt.s32.f32 %v2025
        %v2033 = vmul.f32 %v2032, %v2030
        %v2034 = vxor.u32 %v2033, 2147483648
        %v2035 = vsel %vm1914, %v2034, %v2033
        %v2036 = vsub.s32 4, %v2012
        %v2037 = vsel %vm1914, %v2036, %v2012
        %v2038 = vsel %vm1913, %v359, %v2035
        %v2039 = vsel %vm1913, 0, %v2037
        %v2040 = vmul.f32 %v2038, %v2038
        %v2041 = vmul.f32 %v2040, -0.001358992
        %v2042 = vadd.f32 %v2041, 0.041655596
        %v2043 = vmul.f32 %v2040, %v2042
        %v2044 = vadd.f32 %v2043, -0.4999988
        %v2045 = vmul.f32 %v2040, %v2044
        %v2046 = vadd.f32 1.0, %v2045
        %v2047 = vmul.f32 %v2038, %v2038
        %v2048 = vmul.f32 %v2047, -0.00019511016
        %v2049 = vadd.f32 %v2048, 0.008332121
        %v2050 = vmul.f32 %v2047, %v2049
        %v2051 = vadd.f32 %v2050, -0.16666654
        %v2052 = vmul.f32 %v2047, %v2051
        %v2053 = vadd.f32 %v2052, 1.0
        %v2054 = vmul.f32 %v2053, %v2038
        %vm2055 = vweird.f32 %v359
        %v2056 = vadd.s32 %v2039, 3
        %v2057 = vand.u32 %v2056, 3
        %vm2058 = vcmp.lt.s32.totalorder %v2057, 2
        %vm2059 = vcmp.eq.s32.totalorder %v2057, 0
        %v2060 = vxor.u32 %v2054, 2147483648
        %v2061 = vsel %vm2059, %v2046, %v2060
        %vm2062 = vcmp.eq.s32.totalorder %v2057, 2
        %v2063 = vxor.u32 %v2046, 2147483648
        %v2064 = vsel %vm2062, %v2063, %v2054
        %v2065 = vsel %vm2058, %v2061, %v2064
        %v2066 = vsel %vm2055, nan, %v2065
        %v2067 = vand.u32 2147483647, %v360
        %vm2068 = vcmp.le.f32.partialorder %v2067, 0.7853982
        %vm2069 = vcmp.lt.s32.totalorder %v360, 0
        %v2070 = vand.u32 %v360, 2139095040
        %v2071 = vshrl.u32 %v2070, 23
        %v2072 = vsub.s32 %v2071, 127
        %v2073 = vand.u32 2147483647, %v360
        %v2074 = vand.u32 %v2073, 8388607
        %v2075 = vor.u32 %v2074, 8388608
        %v2076 = vsub.s32 0, %v2075
        %v2077 = vadd.s32 %v2072, 1
        %vm2078 = vcmp.gt.s32.totalorder %v2077, 0
        %v2079 = vsel %vm2078, %v2077, 0
        %v2080 = vshrl.u32 %v2079, 5
        %v2081 = vand.u32 %v2079, 31
        %v2082 = vsub.s32 32, %v2081
        %v2083 = vshrl.u32 683565275, %v2082
        %v2084 = vshll.u32 683565275, %v2081
        %v2085 = vshrl.u32 2475754826, %v2082
        %v2086 = vor.u32 %v2084, %v2085
        %v2087 = vshll.u32 2475754826, %v2081
        %v2088 = vshrl.u32 2131351028, %v2082
        %v2089 = vor.u32 %v2087, %v2088
        %v2090 = vshll.u32 2131351028, %v2081
        %v2091 = vshrl.u32 2102212464, %v2082
        %v2092 = vor.u32 %v2090, %v2091
        %v2093 = vshll.u32 2102212464, %v2081
        %v2094 = vshrl.u32 920167782, %v2082
        %v2095 = vor.u32 %v2093, %v2094
        %v2096 = vshll.u32 920167782, %v2081
        %v2097 = vshrl.u32 1326507024, %v2082
        %v2098 = vor.u32 %v2096, %v2097
        %vm2099 = vcmp.lt.s32.totalorder %v2080, 1
        %vm2100 = vcmp.lt.s32.totalorder %v2080, 2
        %vm2101 = vcmp.lt.s32.totalorder %v2080, 3
        %vm2102 = vcmp.lt.s32.totalorder %v2080, 4
        %v2103 = vsel %vm2099, %v2083, %v2086
        %v2104 = vsel %vm2102, %v2092, 2102212464
        %v2105 = vsel %vm2101, %v2089, %v2104
        %v2106 = vsel %vm2100, %v2103, %v2105
        %v2107 = vsel %vm2099, %v2086, %v2089
        %v2108 = vsel %vm2102, %v2095, 920167782
        %v2109 = vsel %vm2101, %v2092, %v2108
        %v2110 = vsel %vm2100, %v2107, %v2109
        %v2111 = vsel %vm2099, %v2089, %v2092
        %v2112 = vsel %vm2102, %v2098, 1326507024
        %v2113 = vsel %vm2101, %v2095, %v2112
        %v2114 = vsel %vm2100, %v2111, %v2113
        %v2115 = vshll.u32 %v2075, 8
        %v2116 = vand.u32 %v2115, 65535
        %v2117 = vshrl.u32 %v2115, 16
        %v2118 = vand.u32 %v2114, 65535
        %v2119 = vshrl.u32 %v2114, 16
        %v2120 = vmul.u32 %v2116, %v2118
        %v2121 = vmul.u32 %v2116, %v2119
        %v2122 = vmul.u32 %v2117, %v2118
        %v2123 = vmul.u32 %v2117, %v2119
        %v2124 = vshll.u32 %v2121, 16
        %v2125 = vshrl.u32 %v2121, 16
        %v2126 = vshll.u32 %v2122, 16
        %v2127 = vshrl.u32 %v2122, 16
        %vm2128 = vc.u32 %v2120, %v2124
        %v2129 = vsel %vm2128, 1, 0
        %v2130 = vadd.s32 %v2120, %v2124
        %v2131 = vadd.s32 %v2123, %v2129
        %vm2132 = vc.u32 %v2130, %v2126
        %v2133 = vsel %vm2132, 1, 0
        %v2134 = vadd.s32 %v2130, %v2126
        %v2135 = vadd.s32 %v2131, %v2133
        %v2136 = vadd.s32 %v2135, %v2125
        %v2137 = vadd.s32 %v2136, %v2127
        %v2138 = vand.u32 %v2115, 65535
        %v2139 = vshrl.u32 %v2115, 16
        %v2140 = vand.u32 %v2110, 65535
        %v2141 = vshrl.u32 %v2110, 16
        %v2142 = vmul.u32 %v2138, %v2140
        %v2143 = vmul.u32 %v2138, %v2141
        %v2144 = vmul.u32 %v2139, %v2140
        %v2145 = vmul.u32 %v2139, %v2141
        %v2146 = vshll.u32 %v2143, 16
        %v2147 = vshrl.u32 %v2143, 16
        %v2148 = vshll.u32 %v2144, 16
        %v2149 = vshrl.u32 %v2144, 16
        %vm2150 = vc.u32 %v2142, %v2146
        %v2151 = vsel %vm2150, 1, 0
        %v2152 = vadd.s32 %v2142, %v2146
        %v2153 = vadd.s32 %v2145, %v2151
        %vm2154 = vc.u32 %v2152, %v2148
        %v2155 = vsel %vm2154, 1, 0
        %v2156 = vadd.s32 %v2152, %v2148
        %v2157 = vadd.s32 %v2153, %v2155
        %v2158 = vadd.s32 %v2157, %v2147
        %v2159 = vadd.s32 %v2158, %v2149
        %v2160 = vmul.u32 %v2115, %v2106
        %v2161 = vadd.s32 %v2137, %v2156
        %vm2162 = vc.u32 %v2137, %v2156
        %v2163 = vadd.s32 %v2159, 1
        %v2164 = vsel %vm2162, %v2163, %v2159
        %v2165 = vadd.s32 %v2160, %v2164
        %v2166 = vadd.s32 %v2165, 536870912
        %v2167 = vshrl.u32 %v2166, 30
        %v2168 = vshll.u32 %v2167, 30
        %v2169 = vsub.s32 %v2165, %v2168
        %vm2170 = vcmp.lt.s32.totalorder %v2169, 0
        %v2171 = vsub.s32 0, %v2169
        %v2172 = vsel %vm2170, %v2171, %v2169
        %v2173 = vclz %v2172
        %v2174 = vsub.s32 %v2173, 2
        %vm2175 = vcmp.gt.s32.totalorder 0, %v2174
        %v2176 = vsel %vm2175, 0, %v2174
        %v2177 = vsub.s32 32, %v2176
        %v2178 = vshll.u32 %v2169, %v2176
        %v2179 = vshrl.u32 %v2161, %v2177
        %v2180 = vor.u32 %v2178, %v2179
        %v2181 = vsub.s32 4294967266, %v2176
        %v2182 = vadd.s32 %v2181, 127
        %v2183 = vshll.u32 %v2182, 23
        %v2184 = vor.u32 4788187, %v2183
        %v2185 = vand.u32 2147483647, %v2184
        %v2187 = vcvt.s32.f32 %v2180
        %v2188 = vmul.f32 %v2187, %v2185
        %v2189 = vxor.u32 %v2188, 2147483648
        %v2190 = vsel %vm2069, %v2189, %v2188
        %v2191 = vsub.s32 4, %v2167
        %v2192 = vsel %vm2069, %v2191, %v2167
        %v2193 = vsel %vm2068, %v360, %v2190
        %v2194 = vsel %vm2068, 0, %v2192
        %v2195 = vmul.f32 %v2193, %v2193
        %v2196 = vmul.f32 %v2195, -0.001358992
        %v2197 = vadd.f32 %v2196, 0.041655596
        %v2198 = vmul.f32 %v2195, %v2197
        %v2199 = vadd.f32 %v2198, -0.4999988
        %v2200 = vmul.f32 %v2195, %v2199
        %v2201 = vadd.f32 1.0, %v2200
        %v2202 = vmul.f32 %v2193, %v2193
        %v2203 = vmul.f32 %v2202, -0.00019511016
        %v2204 = vadd.f32 %v2203, 0.008332121
        %v2205 = vmul.f32 %v2202, %v2204
        %v2206 = vadd.f32 %v2205, -0.16666654
        %v2207 = vmul.f32 %v2202, %v2206
        %v2208 = vadd.f32 %v2207, 1.0
        %v2209 = vmul.f32 %v2208, %v2193
        %vm2210 = vweird.f32 %v360
        %v2211 = vadd.s32 %v2194, 3
        %v2212 = vand.u32 %v2211, 3
        %vm2213 = vcmp.lt.s32.totalorder %v2212, 2
        %vm2214 = vcmp.eq.s32.totalorder %v2212, 0
        %v2215 = vxor.u32 %v2209, 2147483648
        %v2216 = vsel %vm2214, %v2201, %v2215
        %vm2217 = vcmp.eq.s32.totalorder %v2212, 2
        %v2218 = vxor.u32 %v2201, 2147483648
        %v2219 = vsel %vm2217, %v2218, %v2209
        %v2220 = vsel %vm2213, %v2216, %v2219
        %v2221 = vsel %vm2210, nan, %v2220
        %v2222 = vand.u32 2147483647, %v361
        %vm2223 = vcmp.le.f32.partialorder %v2222, 0.7853982
        %vm2224 = vcmp.lt.s32.totalorder %v361, 0
        %v2225 = vand.u32 %v361, 2139095040
        %v2226 = vshrl.u32 %v2225, 23
        %v2227 = vsub.s32 %v2226, 127
        %v2228 = vand.u32 2147483647, %v361
        %v2229 = vand.u32 %v2228, 8388607
        %v2230 = vor.u32 %v2229, 8388608
        %v2231 = vsub.s32 0, %v2230
        %v2232 = vadd.s32 %v2227, 1
        %vm2233 = vcmp.gt.s32.totalorder %v2232, 0
        %v2234 = vsel %vm2233, %v2232, 0
        %v2235 = vshrl.u32 %v2234, 5
        %v2236 = vand.u32 %v2234, 31
        %v2237 = vsub.s32 32, %v2236
        %v2238 = vshrl.u32 683565275, %v2237
        %v2239 = vshll.u32 683565275, %v2236
        %v2240 = vshrl.u32 2475754826, %v2237
        %v2241 = vor.u32 %v2239, %v2240
        %v2242 = vshll.u32 2475754826, %v2236
        %v2243 = vshrl.u32 2131351028, %v2237
        %v2244 = vor.u32 %v2242, %v2243
        %v2245 = vshll.u32 2131351028, %v2236
        %v2246 = vshrl.u32 2102212464, %v2237
        %v2247 = vor.u32 %v2245, %v2246
        %v2248 = vshll.u32 2102212464, %v2236
        %v2249 = vshrl.u32 920167782, %v2237
        %v2250 = vor.u32 %v2248, %v2249
        %v2251 = vshll.u32 920167782, %v2236
        %v2252 = vshrl.u32 1326507024, %v2237
        %v2253 = vor.u32 %v2251, %v2252
        %vm2254 = vcmp.lt.s32.totalorder %v2235, 1
        %vm2255 = vcmp.lt.s32.totalorder %v2235, 2
        %vm2256 = vcmp.lt.s32.totalorder %v2235, 3
        %vm2257 = vcmp.lt.s32.totalorder %v2235, 4
        %v2258 = vsel %vm2254, %v2238, %v2241
        %v2259 = vsel %vm2257, %v2247, 2102212464
        %v2260 = vsel %vm2256, %v2244, %v2259
        %v2261 = vsel %vm2255, %v2258, %v2260
        %v2262 = vsel %vm2254, %v2241, %v2244
        %v2263 = vsel %vm2257, %v2250, 920167782
        %v2264 = vsel %vm2256, %v2247, %v2263
        %v2265 = vsel %vm2255, %v2262, %v2264
        %v2266 = vsel %vm2254, %v2244, %v2247
        %v2267 = vsel %vm2257, %v2253, 1326507024
        %v2268 = vsel %vm2256, %v2250, %v2267
        %v2269 = vsel %vm2255, %v2266, %v2268
        %v2270 = vshll.u32 %v2230, 8
        %v2271 = vand.u32 %v2270, 65535
        %v2272 = vshrl.u32 %v2270, 16
        %v2273 = vand.u32 %v2269, 65535
        %v2274 = vshrl.u32 %v2269, 16
        %v2275 = vmul.u32 %v2271, %v2273
        %v2276 = vmul.u32 %v2271, %v2274
        %v2277 = vmul.u32 %v2272, %v2273
        %v2278 = vmul.u32 %v2272, %v2274
        %v2279 = vshll.u32 %v2276, 16
        %v2280 = vshrl.u32 %v2276, 16
        %v2281 = vshll.u32 %v2277, 16
        %v2282 = vshrl.u32 %v2277, 16
        %vm2283 = vc.u32 %v2275, %v2279
        %v2284 = vsel %vm2283, 1, 0
        %v2285 = vadd.s32 %v2275, %v2279
        %v2286 = vadd.s32 %v2278, %v2284
        %vm2287 = vc.u32 %v2285, %v2281
        %v2288 = vsel %vm2287, 1, 0
        %v2289 = vadd.s32 %v2285, %v2281
        %v2290 = vadd.s32 %v2286, %v2288
        %v2291 = vadd.s32 %v2290, %v2280
        %v2292 = vadd.s32 %v2291, %v2282
        %v2293 = vand.u32 %v2270, 65535
        %v2294 = vshrl.u32 %v2270, 16
        %v2295 = vand.u32 %v2265, 65535
        %v2296 = vshrl.u32 %v2265, 16
        %v2297 = vmul.u32 %v2293, %v2295
        %v2298 = vmul.u32 %v2293, %v2296
        %v2299 = vmul.u32 %v2294, %v2295
        %v2300 = vmul.u32 %v2294, %v2296
        %v2301 = vshll.u32 %v2298, 16
        %v2302 = vshrl.u32 %v2298, 16
        %v2303 = vshll.u32 %v2299, 16
        %v2304 = vshrl.u32 %v2299, 16
        %vm2305 = vc.u32 %v2297, %v2301
        %v2306 = vsel %vm2305, 1, 0
        %v2307 = vadd.s32 %v2297, %v2301
        %v2308 = vadd.s32 %v2300, %v2306
        %vm2309 = vc.u32 %v2307, %v2303
        %v2310 = vsel %vm2309, 1, 0
        %v2311 = vadd.s32 %v2307, %v2303
        %v2312 = vadd.s32 %v2308, %v2310
        %v2313 = vadd.s32 %v2312, %v2302
        %v2314 = vadd.s32 %v2313, %v2304
        %v2315 = vmul.u32 %v2270, %v2261
        %v2316 = vadd.s32 %v2292, %v2311
        %vm2317 = vc.u32 %v2292, %v2311
        %v2318 = vadd.s32 %v2314, 1
        %v2319 = vsel %vm2317, %v2318, %v2314
        %v2320 = vadd.s32 %v2315, %v2319
        %v2321 = vadd.s32 %v2320, 536870912
        %v2322 = vshrl.u32 %v2321, 30
        %v2323 = vshll.u32 %v2322, 30
        %v2324 = vsub.s32 %v2320, %v2323
        %vm2325 = vcmp.lt.s32.totalorder %v2324, 0
        %v2326 = vsub.s32 0, %v2324
        %v2327 = vsel %vm2325, %v2326, %v2324
        %v2328 = vclz %v2327
        %v2329 = vsub.s32 %v2328, 2
        %vm2330 = vcmp.gt.s32.totalorder 0, %v2329
        %v2331 = vsel %vm2330, 0, %v2329
        %v2332 = vsub.s32 32, %v2331
        %v2333 = vshll.u32 %v2324, %v2331
        %v2334 = vshrl.u32 %v2316, %v2332
        %v2335 = vor.u32 %v2333, %v2334
        %v2336 = vsub.s32 4294967266, %v2331
        %v2337 = vadd.s32 %v2336, 127
        %v2338 = vshll.u32 %v2337, 23
        %v2339 = vor.u32 4788187, %v2338
        %v2340 = vand.u32 2147483647, %v2339
        %v2342 = vcvt.s32.f32 %v2335
        %v2343 = vmul.f32 %v2342, %v2340
        %v2344 = vxor.u32 %v2343, 2147483648
        %v2345 = vsel %vm2224, %v2344, %v2343
        %v2346 = vsub.s32 4, %v2322
        %v2347 = vsel %vm2224, %v2346, %v2322
        %v2348 = vsel %vm2223, %v361, %v2345
        %v2349 = vsel %vm2223, 0, %v2347
        %v2350 = vmul.f32 %v2348, %v2348
        %v2351 = vmul.f32 %v2350, -0.001358992
        %v2352 = vadd.f32 %v2351, 0.041655596
        %v2353 = vmul.f32 %v2350, %v2352
        %v2354 = vadd.f32 %v2353, -0.4999988
        %v2355 = vmul.f32 %v2350, %v2354
        %v2356 = vadd.f32 1.0, %v2355
        %v2357 = vmul.f32 %v2348, %v2348
        %v2358 = vmul.f32 %v2357, -0.00019511016
        %v2359 = vadd.f32 %v2358, 0.008332121
        %v2360 = vmul.f32 %v2357, %v2359
        %v2361 = vadd.f32 %v2360, -0.16666654
        %v2362 = vmul.f32 %v2357, %v2361
        %v2363 = vadd.f32 %v2362, 1.0
        %v2364 = vmul.f32 %v2363, %v2348
        %vm2365 = vweird.f32 %v361
        %v2366 = vadd.s32 %v2349, 3
        %v2367 = vand.u32 %v2366, 3
        %vm2368 = vcmp.lt.s32.totalorder %v2367, 2
        %vm2369 = vcmp.eq.s32.totalorder %v2367, 0
        %v2370 = vxor.u32 %v2364, 2147483648
        %v2371 = vsel %vm2369, %v2356, %v2370
        %vm2372 = vcmp.eq.s32.totalorder %v2367, 2
        %v2373 = vxor.u32 %v2356, 2147483648
        %v2374 = vsel %vm2372, %v2373, %v2364
        %v2375 = vsel %vm2368, %v2371, %v2374
        %v2376 = vsel %vm2365, nan, %v2375
        %2377 = vst [vmem:[%s164] sm:$0xff] %v516
        %2378 = vst [vmem:[%s164 + $0x8] sm:$0xff] %v671
        %2379 = vst [vmem:[%s164 + $0x10] sm:$0xff] %v826
        %2380 = vst [vmem:[%s164 + $0x18] sm:$0xff] %v981
        %2381 = vst [vmem:[%s164 + $0x20] sm:$0xff] %v1136
        %2382 = vst [vmem:[%s164 + $0x28] sm:$0xff] %v1291
        %2383 = vst [vmem:[%s164 + $0x30] sm:$0xff] %v1446
        %2384 = vst [vmem:[%s164 + $0x38] sm:$0xff] %v1601
        %2385 = vst [vmem:[%s164 + $0x40] sm:$0xff] %v1756
        %2386 = vst [vmem:[%s164 + $0x48] sm:$0xff] %v1911
        %2387 = vst [vmem:[%s164 + $0x50] sm:$0xff] %v2066
        %2388 = vst [vmem:[%s164 + $0x58] sm:$0xff] %v2221
        %2389 = vst [vmem:[%s164 + $0x60] sm:$0xff] %v2376
        %s2390 = sand.u32 %s93, 1
        %s2391 = scalar_lea.sflag [#allocation3], %s2390
        %s2392 = sand.u32 %s93, 1
        %s2393 = smul.addr %s2392, 104
        %s2394 = scalar_lea.vmem [#allocation2], %s2393
        // Predicated region
        $region33: #{tpu_custom_call.1} parent=31 // pred_check
          %p2395 = pneg %p103
        $region34: #{tpu_custom_call.1} parent=31 // pred_check_branch
          %2397 = sbr.rel (%p2395) target = $region36
        $region35: #{tpu_custom_call.1} parent=31 // pred_region
          %s2398 = smul.u32 13, %s17
          %2400 = vsyncadd %s2391, 0
          %s2401 = smul.addr %s2398, 8
          %s2402 = scalar_lea.hbm %s3, %s2401
          %s2403 = sshll.u32 %s2394, 4
          %s2404 = int_to_ptr.vmem [resolvable:$true] %s2403
          %s2405 = sshll.u32 %s2402, 4
          %s2406 = int_to_ptr.hbm [resolvable:$true] %s2405
          %2411 = dma.vmem_to_hbm [thread:$0]  %s2404, 1664, %s2406, %s2391, 128, 128, 8
        $region36: #{tpu_custom_call.1} parent=31 // pred_fallthru
          _
      $region32: #{tpu_custom_call.1} parent=5 // pred_fallthru
        _
      %p2412 = scmp.le.s32.totalorder 2, %s12
      // Predicated region
      $region37: #{tpu_custom_call.1} parent=5 // pred_check
        %p2413 = pneg %p2412
      $region38: #{tpu_custom_call.1} parent=5 // pred_check_branch
        %2415 = sbr.rel (%p2413) target = $region40
      $region39: #{tpu_custom_call.1} parent=5 // pred_region
        %s2416 = ssub.s32 %s12, 2
        // Predicated region
        $region41: #{tpu_custom_call.1} parent=39 // pred_check
          %p2417 = pneg %p109
        $region42: #{tpu_custom_call.1} parent=39 // pred_check_branch
          %2419 = sbr.rel (%p2417) target = $region44
        $region43: #{tpu_custom_call.1} parent=39 // pred_region
          %s2420 = sand.u32 %s94, 1
          %s2421 = scalar_lea.sflag [#allocation3], %s2420
          %s2422 = sand.u32 %s94, 1
          %s2423 = smul.addr %s2422, 104
          %s2424 = scalar_lea.vmem [#allocation2], %s2423
          %2426 = dma.done %s2421, 1664
        $region44: #{tpu_custom_call.1} parent=39 // pred_fallthru
          _
      $region40: #{tpu_custom_call.1} parent=5 // pred_fallthru
        _
    $region6: #{tpu_custom_call.1} parent=1 // loop_footer
      %s16 = sadd.s32 1, %s12
    $region7: #{tpu_custom_call.1} parent=1 // loop_footer_branch
      %11 = sbr.rel target = $region3
    $region8: #{tpu_custom_call.1} parent=1 // loop_exit
      _
    %2427 = vsyncpa [#allocation3], 1
    %s2428 = scalar_lea.sflag [#allocation3], 1
    %2429 = vsyncpa %s2428, 1

</llo_original>
